<compile_context>
chip_gen: v6e
topology: v6e:2x2x1
jax: 0.10.0
libtpu: 0.0.40
codegen_flags: <defaults>
</compile_context>

<pallas_src>
import functools

import jax
import jax.numpy as jnp
from jax import lax
from jax.experimental import pallas as pl
from jax.experimental.pallas import tpu as pltpu

IGNORE_INDEX = -100
_NEG_BIG = -1e30          # finite "-inf" for masked (padded) vocab columns, f32
_MIB = 1024 * 1024


def _round_up(a, m):
    return ((a + m - 1) // m) * m


# --------------------------------------------------------------------------
# Hardware query (generation-aware tiling).
# --------------------------------------------------------------------------
@functools.lru_cache(maxsize=None)
def _tpu_generation_info():
    vmem_cap = 64 * _MIB          # conservative default (v7x-sized)
    cores = 1
    try:
        info = pltpu.get_tpu_info()
        vmem_cap = int(getattr(info, "vmem_capacity_bytes", vmem_cap))
    except Exception:
        pass
    try:
        dev = jax.devices()[0]
        kind = str(getattr(dev, "device_kind", "")).lower()
        nc = getattr(dev, "num_cores", None)
        if nc:
            cores = max(cores, int(nc))
        if "v7" in kind:
            cores = max(cores, 2)
        if vmem_cap == 64 * _MIB and ("v5" in kind or "v6" in kind):
            vmem_cap = 128 * _MIB
    except Exception:
        pass
    return vmem_cap, cores


def _choose_tiles(n, v, h, itemsize):
    """Returns (tn, tv, vmem_limit_bytes)."""
    vmem_cap, cores = _tpu_generation_info()
    if vmem_cap <= 64 * _MIB:          # v7x-class parts: 64 MiB physical VMEM
        vmem_limit = 52 * _MIB
        tile_budget = 26 * _MIB
        tn_max = 1024
    else:                              # v5e / v6e: 128 MiB physical VMEM
        vmem_limit = 96 * _MIB
        tile_budget = 64 * _MIB
        tn_max = 2048

    # Sublane packing tile for the activation dtype (f32->8, bf16->16, int8->32).
    pack = max(8, 32 // max(itemsize, 1))

    # Vocab tile: 512 (the padded-vocab mask is folded into the bias row),
    # or the whole 128-rounded vocab when it is small.
    tv = 512 if v > 512 else _round_up(max(v, 1), 128)

    # Token tile: fill the remaining double-buffered budget.  Per-token bytes:
    #   x tile (2-buffered) + two (tn,1) int32 label tiles (lane padded,
    #   2-buffered) + (tn,4) f32 output tile (2-buffered) + (tn,8) f32 scratch
    #   + ~3 live (tn,tv) f32 in-kernel temporaries.
    per_token = (2 * h * itemsize
                 + 2 * 2 * 128 * 4
                 + 2 * 128 * 4
                 + 128 * 4
                 + 3 * tv * 4)
    wt_bytes = 2 * tv * h * itemsize + 2 * tv * 4     # weight tile + bias row
    tn_cap = int(max(tile_budget - wt_bytes, 0) // per_token)
    tn_cap = max(pack, min(tn_max, tn_cap))

    if n <= tn_cap:
        tn = _round_up(max(n, pack), pack)
    else:
        tn = max(128, (tn_cap // 128) * 128)

    # 2-TensorCore parts (v7x): make sure the "parallel" token axis has at
    # least two tiles so both cores get work.
    if cores >= 2 and n > pack:
        tn_half = _round_up((n + 1) // 2, pack)
        tn = min(tn, max(pack, tn_half))

    return tn, tv, vmem_limit


# --------------------------------------------------------------------------
# Pallas kernel: fused linear + log-softmax statistics per token.
# Output per token (f32): [logit@target, logit@nll_target, logsumexp, sum_logits]
# Scratch columns: 0=max, 1=sumexp, 2=tgt, 3=nll, 4=sum_logits.
# --------------------------------------------------------------------------
def _orpo_stats_kernel(x_ref, w_ref, *rest, has_bias_row, has_nll, f32_precise):
    idx = 0
    b_ref = None
    if has_bias_row:
        b_ref = rest[idx]; idx += 1
    y_ref = rest[idx]; idx += 1
    ynll_ref = None
    if has_nll:
        ynll_ref = rest[idx]; idx += 1
    o_ref = rest[idx]; idx += 1
    sc = rest[idx]

    j = pl.program_id(1)           # vocab-tile index (reduction axis, innermost)

    @pl.when(j == 0)
    def _():
        sc[...] = jnp.zeros_like(sc)
        sc[:, 0:1] = jnp.full((sc.shape[0], 1), -jnp.inf, dtype=sc.dtype)

    precision = lax.Precision.HIGHEST if f32_precise else None
    raw = lax.dot_general(
        x_ref[...], w_ref[...], (((1,), (1,)), ((), ())),
        precision=precision,
        preferred_element_type=jnp.float32)                  # (TN, TV) f32

    # Aux statistic: per-token sum of logits.  Padded W rows are exactly zero,
    # so the full-tile sum equals the real-vocab sum; the bias sum is added in
    # the wrapper.  One XLU lane-reduction per step, hidden under the MXU.
    sc[:, 4:5] = sc[:, 4:5] + jnp.sum(raw, axis=-1, keepdims=True)

    if has_bias_row:
        logits = raw + b_ref[...]          # f32 bias row, -1e30 on padded cols
    else:
        logits = raw

    tv_blk = logits.shape[-1]
    lane_idx = lax.broadcasted_iota(jnp.int32, logits.shape, 1) + j * tv_blk

    # --- online logsumexp over the vocab axis ---
    m_prev = sc[:, 0:1]
    m_new = jnp.maximum(m_prev, jnp.max(logits, axis=-1, keepdims=True))
    sc[:, 1:2] = sc[:, 1:2] * jnp.exp(m_prev - m_new) + jnp.sum(
        jnp.exp(logits - m_new), axis=-1, keepdims=True)
    sc[:, 0:1] = m_new

    # --- gather logit at target (and optionally nll-target) labels ---
    sc[:, 2:3] = sc[:, 2:3] + jnp.sum(
        jnp.where(lane_idx == y_ref[...], logits, 0.0), axis=-1, keepdims=True)
    if has_nll:
        sc[:, 3:4] = sc[:, 3:4] + jnp.sum(
            jnp.where(lane_idx == ynll_ref[...], logits, 0.0),
            axis=-1, keepdims=True)

    @pl.when(j == pl.num_programs(1) - 1)
    def _():
        tgt = sc[:, 2:3]
        o_ref[:, 0:1] = tgt
        o_ref[:, 1:2] = sc[:, 3:4] if has_nll else tgt
        o_ref[:, 2:3] = sc[:, 0:1] + jnp.log(sc[:, 1:2])
        o_ref[:, 3:4] = sc[:, 4:5]


def _token_stats(x2d, weight, bias_row, y2d, ynll2d, *, tn, tv, vmem_limit):
    """Returns (n_pad, 4) f32: [logit@y, logit@nll_y, logsumexp, sum_logits]."""
    n_pad, h = x2d.shape
    v_pad = weight.shape[0]
    assert n_pad % tn == 0 and v_pad % tv == 0
    grid = (n_pad // tn, v_pad // tv)

    has_bias_row = bias_row is not None
    has_nll = ynll2d is not None
    f32_precise = (x2d.dtype == jnp.float32 and weight.dtype == jnp.float32)

    kernel = functools.partial(
        _orpo_stats_kernel, has_bias_row=has_bias_row, has_nll=has_nll,
        f32_precise=f32_precise)

    in_specs = [
        pl.BlockSpec((tn, h), lambda i, j: (i, 0)),   # x tokens
        pl.BlockSpec((tv, h), lambda i, j: (j, 0)),   # weight tile
    ]
    args = [x2d, weight]
    if has_bias_row:
        in_specs.append(pl.BlockSpec((1, tv), lambda i, j: (0, j)))
        args.append(bias_row)
    in_specs.append(pl.BlockSpec((tn, 1), lambda i, j: (i, 0)))   # target ids
    args.append(y2d)
    if has_nll:
        in_specs.append(pl.BlockSpec((tn, 1), lambda i, j: (i, 0)))  # nll ids
        args.append(ynll2d)

    cost = pl.CostEstimate(
        flops=2 * n_pad * v_pad * h,
        transcendentals=n_pad * v_pad,
        bytes_accessed=(n_pad * h * x2d.dtype.itemsize
                        + grid[0] * v_pad * h * weight.dtype.itemsize
                        + n_pad * 4 * 4
                        + n_pad * 4 * (2 if has_nll else 1)))

    return pl.pallas_call(
        kernel,
        out_shape=jax.ShapeDtypeStruct((n_pad, 4), jnp.float32),
        grid_spec=pltpu.PrefetchScalarGridSpec(
            num_scalar_prefetch=0,
            grid=grid,
            in_specs=in_specs,
            out_specs=pl.BlockSpec((tn, 4), lambda i, j: (i, 0)),
            scratch_shapes=[pltpu.VMEM((tn, 8), jnp.float32)],
        ),
        compiler_params=pltpu.CompilerParams(
            dimension_semantics=("parallel", "arbitrary"),
            vmem_limit_bytes=vmem_limit),
        cost_estimate=cost,
    )(*args)


# --------------------------------------------------------------------------
# LigerLMHeadORPO forward (linear head + fused-linear ORPO loss)
# --------------------------------------------------------------------------
def liger_lm_head_orpo_forward(x, y, weight, bias=None, nll_target=None,
                               ignore_index=IGNORE_INDEX, beta=0.1):
    two_b, t, h = x.shape
    b = two_b // 2
    v = weight.shape[0]
    n = two_b * t

    if weight.dtype != x.dtype:           # keep operands in one native dtype
        weight = weight.astype(x.dtype)

    tn, tv, vmem_limit = _choose_tiles(n, v, h, x.dtype.itemsize)
    n_pad = _round_up(n, tn)
    v_pad = _round_up(v, tv)

    x2d = x.reshape(n, h)
    x2d_p = x2d if n_pad == n else jnp.pad(x2d, ((0, n_pad - n), (0, 0)))
    w_p = weight if v_pad == v else jnp.pad(weight, ((0, v_pad - v), (0, 0)))

    # Bias row in f32 with the padded-vocab mask folded in (-1e30 on pad
    # columns) so the kernel needs no per-step lane compare/select.
    bias_row = None
    if bias is not None or v_pad != v:
        base = (jnp.zeros((v,), jnp.float32) if bias is None
                else bias.astype(jnp.float32))
        if v_pad != v:
            base = jnp.concatenate(
                [base, jnp.full((v_pad - v,), _NEG_BIG, jnp.float32)])
        bias_row = base.reshape(1, v_pad)

    y_full = y.astype(jnp.int32)
    has_nll = nll_target is not None
    ynll_full = nll_target.astype(jnp.int32) if has_nll else y_full

    def _prep_labels(lab):
        flat = jnp.where(lab == ignore_index, 0, lab).reshape(n)
        if n_pad != n:
            flat = jnp.pad(flat, (0, n_pad - n))
        return flat.reshape(n_pad, 1).astype(jnp.int32)

    y2d = _prep_labels(y_full)
    ynll2d = _prep_labels(ynll_full) if has_nll else None

    # ---- fused kernel ------------------------------------------------------
    stats = _token_stats(x2d_p, w_p, bias_row, y2d, ynll2d,
                         tn=tn, tv=tv, vmem_limit=vmem_limit)[:n]
    tgt_logit = stats[:, 0].reshape(two_b, t)
    nll_logit = stats[:, 1].reshape(two_b, t)
    lse = stats[:, 2].reshape(two_b, t)
    bias_sum = 0.0 if bias is None else jnp.sum(bias.astype(jnp.float32))
    logits_sum = stats[:, 3].reshape(two_b, t) + bias_sum

    # ---- per-sequence average log-prob at the target labels ----------------
    loss_mask = (y_full != ignore_index).astype(jnp.float32)
    per_token_logp = tgt_logit - lse
    avg_logp = jnp.sum(per_token_logp * loss_mask, axis=-1) / jnp.sum(
        loss_mask, axis=-1)
    chosen_logps = avg_logp[:b]
    rejected_logps = avg_logp[b:]

    # ---- NLL on the chosen half ---------------------------------------------
    nll_mask = (ynll_full != ignore_index)
    per_token_nll = -(nll_logit - lse)
    chosen_nll_loss = (jnp.sum(jnp.where(nll_mask[:b], per_token_nll[:b], 0.0))
                       / jnp.sum(nll_mask[:b].astype(jnp.float32)))

    # ---- aux logits means (sum over V comes from the kernel) ----------------
    denom = float(b * t * v)
    chosen_logits_mean = jnp.sum(logits_sum[:b]) / denom
    rejected_logits_mean = jnp.sum(logits_sum[b:]) / denom

    # ---- ORPO preference term ------------------------------------------------
    log_odds = (chosen_logps - rejected_logps) - (
        jnp.log1p(-jnp.exp(chosen_logps)) - jnp.log1p(-jnp.exp(rejected_logps)))
    ratio = jax.nn.log_sigmoid(log_odds)
    preference_loss = beta * jnp.sum(ratio) / b
    chosen_rewards = beta * chosen_logps
    rejected_rewards = beta * rejected_logps
    log_odds_ratio = jnp.sum(ratio) / b
    log_odds_chosen = jnp.sum(log_odds) / b

    loss = chosen_nll_loss - preference_loss
    return loss, (chosen_logps, rejected_logps, chosen_logits_mean,
                  rejected_logits_mean, chosen_nll_loss, chosen_rewards,
                  rejected_rewards, log_odds_ratio, log_odds_chosen)


# --------------------------------------------------------------------------
# Pure-JAX reference (mirrors the Liger / HF ORPO math) for verification
# --------------------------------------------------------------------------
def _reference(x, y, weight, bias=None, nll_target=None,
               ignore_index=IGNORE_INDEX, beta=0.1):
    two_b, t, h = x.shape
    b = two_b // 2
    logits = jnp.einsum("bth,vh->btv", x, weight, precision="highest")
    if bias is not None:
        logits = logits + bias
    logp = jax.nn.log_softmax(logits.astype(jnp.float32), axis=-1)
    mask = (y != ignore_index)
    lab = jnp.where(mask, y, 0)
    per_tok = jnp.take_along_axis(logp, lab[..., None], axis=-1)[..., 0]
    avg = jnp.sum(per_tok * mask, axis=-1) / jnp.sum(mask, axis=-1)
    c_lp, r_lp = avg[:b], avg[b:]

    ynll = y if nll_target is None else nll_target
    nll_mask = (ynll != ignore_index)
    nll_lab = jnp.where(nll_mask, ynll, 0)
    nll_tok = -jnp.take_along_axis(logp, nll_lab[..., None], axis=-1)[..., 0]
    nll = jnp.sum(jnp.where(nll_mask[:b], nll_tok[:b], 0.0)) / jnp.sum(nll_mask[:b])

    log_odds = (c_lp - r_lp) - (jnp.log1p(-jnp.exp(c_lp)) - jnp.log1p(-jnp.exp(r_lp)))
    ratio = jax.nn.log_sigmoid(log_odds)
    return nll - beta * jnp.sum(ratio) / b


if __name__ == "__main__":
    # Ragged V / T on purpose so vocab padding + the folded mask is exercised.
    B, T, H, V = 2, 7, 32, 250          # 2B = 4 sequences (chosen + rejected)
    key = jax.random.PRNGKey(0)
    kw, kx, ky, kn, kb = jax.random.split(key, 5)

    bound = 1.0 / (H ** 0.5)            # torch.nn.Linear default init
    weight = jax.random.uniform(kw, (V, H), jnp.float32, -bound, bound)
    bias_vec = jax.random.uniform(kb, (V,), jnp.float32, -bound, bound)
    x = jax.random.normal(kx, (2 * B, T, H), jnp.float32)
    y = jax.random.randint(ky, (2 * B, T), 0, V).astype(jnp.int32)
    y = y.at[:, -1].set(IGNORE_INDEX)   # a few ignored positions
    nll_target = jax.random.randint(kn, (2 * B, T), 0, V).astype(jnp.int32)
    nll_target = nll_target.at[:, -1].set(IGNORE_INDEX)

    fwd = jax.jit(functools.partial(
        liger_lm_head_orpo_forward, ignore_index=IGNORE_INDEX, beta=0.1))

    # no bias, explicit nll_target
    loss, aux = fwd(x, y, weight, None, nll_target)
    jax.block_until_ready(loss)
    ref_loss = _reference(x, y, weight, None, nll_target)
    assert jnp.allclose(loss, ref_loss, rtol=5e-3, atol=5e-3), (loss, ref_loss)
    assert all(jnp.all(jnp.isfinite(jnp.asarray(a))) for a in aux)

    # bias path
    loss_b, _ = fwd(x, y, weight, bias_vec, nll_target)
    jax.block_until_ready(loss_b)
    ref_b = _reference(x, y, weight, bias_vec, nll_target)
    assert jnp.allclose(loss_b, ref_b, rtol=5e-3, atol=5e-3), (loss_b, ref_b)

    # nll_target=None path (second gather statically skipped)
    loss_nn, _ = fwd(x, y, weight, None, None)
    jax.block_until_ready(loss_nn)
    ref_nn = _reference(x, y, weight, None, None)
    assert jnp.allclose(loss_nn, ref_nn, rtol=5e-3, atol=5e-3), (loss_nn, ref_nn)

    # bf16 fast path: operands stay bf16 all the way into the MXU
    loss_bf16, aux_bf16 = fwd(x.astype(jnp.bfloat16), y,
                              weight.astype(jnp.bfloat16), None, nll_target)
    jax.block_until_ready(loss_bf16)
    assert jnp.isfinite(loss_bf16)
    assert all(jnp.all(jnp.isfinite(jnp.asarray(a))) for a in aux_bf16)

    print("KERNEL_OK")
</pallas_src>

<mosaic_0001>
module attributes {stable_mosaic.version = 11 : i64} {
  func.func @_orpo_stats_kernel(%arg0: i32, %arg1: i32, %arg2: memref<32x32xf32, #tpu.memory_space<vmem>>, %arg3: memref<256x32xf32, #tpu.memory_space<vmem>>, %arg4: memref<1x256xf32, #tpu.memory_space<vmem>>, %arg5: memref<32x1xi32, #tpu.memory_space<vmem>>, %arg6: memref<32x1xi32, #tpu.memory_space<vmem>>, %arg7: memref<32x4xf32, #tpu.memory_space<vmem>>, %arg8: memref<32x8xf32, #tpu.memory_space<vmem>>) attributes {dimension_semantics = [#tpu.dimension_semantics<parallel>, #tpu.dimension_semantics<arbitrary>], iteration_bounds = array<i64: 1, 1>, scalar_prefetch = 0 : i64, scratch_operands = 1 : i64, tpu.core_type = #tpu.core_type<tc>, window_params = [{transform_indices = @transform_0, window_bounds = array<i64: 32, 32>}, {transform_indices = @transform_1, window_bounds = array<i64: 256, 32>}, {transform_indices = @transform_2, window_bounds = array<i64: 1, 256>}, {transform_indices = @transform_3, window_bounds = array<i64: 32, 1>}, {transform_indices = @transform_4, window_bounds = array<i64: 32, 1>}, {transform_indices = @transform_5, window_bounds = array<i64: 32, 4>}]} {
    %c0_i32 = arith.constant 0 : i32
    %0 = arith.cmpi eq, %arg1, %c0_i32 : i32
    %1 = arith.extui %0 : i1 to i32
    %c0_i32_0 = arith.constant 0 : i32
    %2 = arith.cmpi ne, %1, %c0_i32_0 : i32
    scf.if %2 {
      %cst_35 = arith.constant 0.000000e+00 : f32
      %57 = vector.broadcast %cst_35 : f32 to vector<32x8xf32>
      %c0_36 = arith.constant 0 : index
      %c0_37 = arith.constant 0 : index
      %58 = vector.load %arg8[%c0_36, %c0_37] : memref<32x8xf32, #tpu.memory_space<vmem>>, vector<32x8xf32>
      tpu.vector_store %arg8[%c0_36, %c0_37], %57 {strides = array<i32>} : memref<32x8xf32, #tpu.memory_space<vmem>>, vector<32x8xf32>,
      %cst_38 = arith.constant 0xFF800000 : f32
      %59 = vector.broadcast %cst_38 : f32 to vector<32x1xf32>
      %c0_39 = arith.constant 0 : index
      %c0_40 = arith.constant 0 : index
      %60 = vector.load %arg8[%c0_39, %c0_40] : memref<32x8xf32, #tpu.memory_space<vmem>>, vector<32x1xf32>
      tpu.vector_store %arg8[%c0_39, %c0_40], %59 {strides = array<i32>} : memref<32x8xf32, #tpu.memory_space<vmem>>, vector<32x1xf32>,
    } else {
    }
    %c0 = arith.constant 0 : index
    %c0_1 = arith.constant 0 : index
    %3 = vector.load %arg2[%c0, %c0_1] : memref<32x32xf32, #tpu.memory_space<vmem>>, vector<32x32xf32>
    %c0_2 = arith.constant 0 : index
    %c0_3 = arith.constant 0 : index
    %4 = vector.load %arg3[%c0_2, %c0_3] : memref<256x32xf32, #tpu.memory_space<vmem>>, vector<256x32xf32>
    %cst = arith.constant dense<0.000000e+00> : vector<32x256xf32>
    %5 = tpu.matmul %3, %4, %cst {dimension_numbers = #tpu.dot_dimension_numbers<[1], [1], [0], [0], [0, 0, 1, 0], [], []>, precision = #tpu.contract_precision<fp32>} : vector<32x32xf32>, vector<256x32xf32>, vector<32x256xf32> -> vector<32x256xf32>
    %c0_4 = arith.constant 0 : index
    %c4 = arith.constant 4 : index
    %6 = vector.load %arg8[%c0_4, %c4] : memref<32x8xf32, #tpu.memory_space<vmem>>, vector<32x1xf32>
    %cst_5 = arith.constant dense<0.000000e+00> : vector<32xf32>
    %7 = vector.multi_reduction <add>, %5, %cst_5 [1] : vector<32x256xf32> to vector<32xf32>
    %8 = vector.shape_cast %7 : vector<32xf32> to vector<32x1xf32>
    %9 = arith.addf %6, %8 : vector<32x1xf32>
    %c0_6 = arith.constant 0 : index
    %c4_7 = arith.constant 4 : index
    %10 = vector.load %arg8[%c0_6, %c4_7] : memref<32x8xf32, #tpu.memory_space<vmem>>, vector<32x1xf32>
    tpu.vector_store %arg8[%c0_6, %c4_7], %9 {strides = array<i32>} : memref<32x8xf32, #tpu.memory_space<vmem>>, vector<32x1xf32>,
    %c0_8 = arith.constant 0 : index
    %c0_9 = arith.constant 0 : index
    %11 = vector.load %arg4[%c0_8, %c0_9] : memref<1x256xf32, #tpu.memory_space<vmem>>, vector<1x256xf32>
    %12 = vector.broadcast %11 : vector<1x256xf32> to vector<32x256xf32>
    %13 = arith.addf %5, %12 : vector<32x256xf32>
    %14 = tpu.iota {dimensions = array<i32: 1>} : vector<32x256xi32>
    %c256_i32 = arith.constant 256 : i32
    %15 = arith.muli %arg1, %c256_i32 : i32
    %16 = vector.broadcast %15 : i32 to vector<32x256xi32>
    %17 = arith.addi %14, %16 : vector<32x256xi32>
    %c0_10 = arith.constant 0 : index
    %c0_11 = arith.constant 0 : index
    %18 = vector.load %arg8[%c0_10, %c0_11] : memref<32x8xf32, #tpu.memory_space<vmem>>, vector<32x1xf32>
    %cst_12 = arith.constant dense<0xFF800000> : vector<32xf32>
    %19 = vector.multi_reduction <maximumf>, %13, %cst_12 [1] : vector<32x256xf32> to vector<32xf32>
    %20 = vector.shape_cast %19 : vector<32xf32> to vector<32x1xf32>
    %21 = arith.maximumf %18, %20 : vector<32x1xf32>
    %c0_13 = arith.constant 0 : index
    %c1 = arith.constant 1 : index
    %22 = vector.load %arg8[%c0_13, %c1] : memref<32x8xf32, #tpu.memory_space<vmem>>, vector<32x1xf32>
    %23 = arith.subf %18, %21 : vector<32x1xf32>
    %24 = math.exp %23 : vector<32x1xf32>
    %25 = arith.mulf %22, %24 : vector<32x1xf32>
    %26 = vector.broadcast %21 : vector<32x1xf32> to vector<32x256xf32>
    %27 = arith.subf %13, %26 : vector<32x256xf32>
    %28 = math.exp %27 : vector<32x256xf32>
    %cst_14 = arith.constant dense<0.000000e+00> : vector<32xf32>
    %29 = vector.multi_reduction <add>, %28, %cst_14 [1] : vector<32x256xf32> to vector<32xf32>
    %30 = vector.shape_cast %29 : vector<32xf32> to vector<32x1xf32>
    %31 = arith.addf %25, %30 : vector<32x1xf32>
    %c0_15 = arith.constant 0 : index
    %c1_16 = arith.constant 1 : index
    %32 = vector.load %arg8[%c0_15, %c1_16] : memref<32x8xf32, #tpu.memory_space<vmem>>, vector<32x1xf32>
    tpu.vector_store %arg8[%c0_15, %c1_16], %31 {strides = array<i32>} : memref<32x8xf32, #tpu.memory_space<vmem>>, vector<32x1xf32>,
    %c0_17 = arith.constant 0 : index
    %c0_18 = arith.constant 0 : index
    %33 = vector.load %arg8[%c0_17, %c0_18] : memref<32x8xf32, #tpu.memory_space<vmem>>, vector<32x1xf32>
    tpu.vector_store %arg8[%c0_17, %c0_18], %21 {strides = array<i32>} : memref<32x8xf32, #tpu.memory_space<vmem>>, vector<32x1xf32>,
    %c0_19 = arith.constant 0 : index
    %c2 = arith.constant 2 : index
    %34 = vector.load %arg8[%c0_19, %c2] : memref<32x8xf32, #tpu.memory_space<vmem>>, vector<32x1xf32>
    %c0_20 = arith.constant 0 : index
    %c0_21 = arith.constant 0 : index
    %35 = vector.load %arg5[%c0_20, %c0_21] : memref<32x1xi32, #tpu.memory_space<vmem>>, vector<32x1xi32>
    %36 = vector.broadcast %35 : vector<32x1xi32> to vector<32x256xi32>
    %37 = arith.cmpi eq, %17, %36 : vector<32x256xi32>
    %cst_22 = arith.constant 0.000000e+00 : f32
    %38 = vector.broadcast %cst_22 : f32 to vector<32x256xf32>
    %39 = arith.select %37, %13, %38 : vector<32x256xi1>, vector<32x256xf32>
    %cst_23 = arith.constant dense<0.000000e+00> : vector<32xf32>
    %40 = vector.multi_reduction <add>, %39, %cst_23 [1] : vector<32x256xf32> to vector<32xf32>
    %41 = vector.shape_cast %40 : vector<32xf32> to vector<32x1xf32>
    %42 = arith.addf %34, %41 : vector<32x1xf32>
    %c0_24 = arith.constant 0 : index
    %c2_25 = arith.constant 2 : index
    %43 = vector.load %arg8[%c0_24, %c2_25] : memref<32x8xf32, #tpu.memory_space<vmem>>, vector<32x1xf32>
    tpu.vector_store %arg8[%c0_24, %c2_25], %42 {strides = array<i32>} : memref<32x8xf32, #tpu.memory_space<vmem>>, vector<32x1xf32>,
    %c0_26 = arith.constant 0 : index
    %c3 = arith.constant 3 : index
    %44 = vector.load %arg8[%c0_26, %c3] : memref<32x8xf32, #tpu.memory_space<vmem>>, vector<32x1xf32>
    %c0_27 = arith.constant 0 : index
    %c0_28 = arith.constant 0 : index
    %45 = vector.load %arg6[%c0_27, %c0_28] : memref<32x1xi32, #tpu.memory_space<vmem>>, vector<32x1xi32>
    %46 = vector.broadcast %45 : vector<32x1xi32> to vector<32x256xi32>
    %47 = arith.cmpi eq, %17, %46 : vector<32x256xi32>
    %cst_29 = arith.constant 0.000000e+00 : f32
    %48 = vector.broadcast %cst_29 : f32 to vector<32x256xf32>
    %49 = arith.select %47, %13, %48 : vector<32x256xi1>, vector<32x256xf32>
    %cst_30 = arith.constant dense<0.000000e+00> : vector<32xf32>
    %50 = vector.multi_reduction <add>, %49, %cst_30 [1] : vector<32x256xf32> to vector<32xf32>
    %51 = vector.shape_cast %50 : vector<32xf32> to vector<32x1xf32>
    %52 = arith.addf %44, %51 : vector<32x1xf32>
    %c0_31 = arith.constant 0 : index
    %c3_32 = arith.constant 3 : index
    %53 = vector.load %arg8[%c0_31, %c3_32] : memref<32x8xf32, #tpu.memory_space<vmem>>, vector<32x1xf32>
    tpu.vector_store %arg8[%c0_31, %c3_32], %52 {strides = array<i32>} : memref<32x8xf32, #tpu.memory_space<vmem>>, vector<32x1xf32>,
    %c0_i32_33 = arith.constant 0 : i32
    %54 = arith.cmpi eq, %arg1, %c0_i32_33 : i32
    %55 = arith.extui %54 : i1 to i32
    %c0_i32_34 = arith.constant 0 : i32
    %56 = arith.cmpi ne, %55, %c0_i32_34 : i32
    scf.if %56 {
      %c0_35 = arith.constant 0 : index
      %c2_36 = arith.constant 2 : index
      %57 = vector.load %arg8[%c0_35, %c2_36] : memref<32x8xf32, #tpu.memory_space<vmem>>, vector<32x1xf32>
      %c0_37 = arith.constant 0 : index
      %c0_38 = arith.constant 0 : index
      %58 = vector.load %arg7[%c0_37, %c0_38] : memref<32x4xf32, #tpu.memory_space<vmem>>, vector<32x1xf32>
      tpu.vector_store %arg7[%c0_37, %c0_38], %57 {strides = array<i32>} : memref<32x4xf32, #tpu.memory_space<vmem>>, vector<32x1xf32>,
      %c0_39 = arith.constant 0 : index
      %c3_40 = arith.constant 3 : index
      %59 = vector.load %arg8[%c0_39, %c3_40] : memref<32x8xf32, #tpu.memory_space<vmem>>, vector<32x1xf32>
      %c0_41 = arith.constant 0 : index
      %c1_42 = arith.constant 1 : index
      %60 = vector.load %arg7[%c0_41, %c1_42] : memref<32x4xf32, #tpu.memory_space<vmem>>, vector<32x1xf32>
      tpu.vector_store %arg7[%c0_41, %c1_42], %59 {strides = array<i32>} : memref<32x4xf32, #tpu.memory_space<vmem>>, vector<32x1xf32>,
      %c0_43 = arith.constant 0 : index
      %c0_44 = arith.constant 0 : index
      %61 = vector.load %arg8[%c0_43, %c0_44] : memref<32x8xf32, #tpu.memory_space<vmem>>, vector<32x1xf32>
      %c0_45 = arith.constant 0 : index
      %c1_46 = arith.constant 1 : index
      %62 = vector.load %arg8[%c0_45, %c1_46] : memref<32x8xf32, #tpu.memory_space<vmem>>, vector<32x1xf32>
      %63 = math.log %62 : vector<32x1xf32>
      %64 = arith.addf %61, %63 : vector<32x1xf32>
      %c0_47 = arith.constant 0 : index
      %c2_48 = arith.constant 2 : index
      %65 = vector.load %arg7[%c0_47, %c2_48] : memref<32x4xf32, #tpu.memory_space<vmem>>, vector<32x1xf32>
      tpu.vector_store %arg7[%c0_47, %c2_48], %64 {strides = array<i32>} : memref<32x4xf32, #tpu.memory_space<vmem>>, vector<32x1xf32>,
      %c0_49 = arith.constant 0 : index
      %c4_50 = arith.constant 4 : index
      %66 = vector.load %arg8[%c0_49, %c4_50] : memref<32x8xf32, #tpu.memory_space<vmem>>, vector<32x1xf32>
      %c0_51 = arith.constant 0 : index
      %c3_52 = arith.constant 3 : index
      %67 = vector.load %arg7[%c0_51, %c3_52] : memref<32x4xf32, #tpu.memory_space<vmem>>, vector<32x1xf32>
      tpu.vector_store %arg7[%c0_51, %c3_52], %66 {strides = array<i32>} : memref<32x4xf32, #tpu.memory_space<vmem>>, vector<32x1xf32>,
    } else {
    }
    return
  }
  func.func @transform_0(%arg0: i32, %arg1: i32) -> (i32, i32) {
    %c0_i32 = arith.constant 0 : i32
    %c0_i32_0 = arith.constant 0 : i32
    return %arg0, %c0_i32 : i32, i32
  }
  func.func @transform_1(%arg0: i32, %arg1: i32) -> (i32, i32) {
    %c0_i32 = arith.constant 0 : i32
    %c0_i32_0 = arith.constant 0 : i32
    return %arg1, %c0_i32 : i32, i32
  }
  func.func @transform_2(%arg0: i32, %arg1: i32) -> (i32, i32) {
    %c0_i32 = arith.constant 0 : i32
    %c0_i32_0 = arith.constant 0 : i32
    return %c0_i32, %arg1 : i32, i32
  }
  func.func @transform_3(%arg0: i32, %arg1: i32) -> (i32, i32) {
    %c0_i32 = arith.constant 0 : i32
    %c0_i32_0 = arith.constant 0 : i32
    return %arg0, %c0_i32 : i32, i32
  }
  func.func @transform_4(%arg0: i32, %arg1: i32) -> (i32, i32) {
    %c0_i32 = arith.constant 0 : i32
    %c0_i32_0 = arith.constant 0 : i32
    return %arg0, %c0_i32 : i32, i32
  }
  func.func @transform_5(%arg0: i32, %arg1: i32) -> (i32, i32) {
    %c0_i32 = arith.constant 0 : i32
    %c0_i32_0 = arith.constant 0 : i32
    return %arg0, %c0_i32 : i32, i32
  }
}

</mosaic_0001>

<llo_original>
// kernel: div.7
$region0: #{div.7}
  #allocation0 [shape = 's32[1]{0}', space=sflag, size = 0x4, scoped, tag = 'scoped memory for div.7']
  %s0 = inlined_call_operand.vmem [shape: f32[4], index: 0, kind: input, shape index: {}]
  %s1 = inlined_call_operand.vmem [shape: f32[4], index: 1, kind: input, shape index: {}]
  %s2 = inlined_call_operand.vmem [shape: f32[4], index: 2, kind: output, shape index: {}]
  %v3 = vld [vmem:[%s0] sm:$0x1]
  %v4 = vld [vmem:[%s1] sm:$0x1]
  %5 = xla_tuple %v3, %v4
  %6 = xla_tuple %5
  %v7 = vrcp.pop %v4
  %v8 = vmul.f32 %v3, %v7
  %9 = xla_tuple %v8
  %10 = vst [vmem:[%s2] sm:$0x1] %v8

// kernel: liger_lm_head_orpo_forward.1
$region0: #{liger_lm_head_orpo_forward.1}
  #allocation0 [shape = 'u32[]', space=smem, size = 0x4, offset = 0x4, fixed_abs, tag = 'smem constant byte address 0x4 - core index']
  #allocation1 [shape = 'u32[144,128]{1,0:T(1,128)}', space=vmem, size = 0x12000, scoped, tag = 'internal scratch']
  #allocation2 [shape = 'f32[32,8]{1,0:T(8,128)}', space=vmem, size = 0x4000, scoped, tag = 'scratch operand']
  %s0 = inlined_call_operand.vmem [shape: f32[32,32], index: 0, kind: input, shape index: {}]
  %s1 = inlined_call_operand.vmem [shape: f32[256,32], index: 1, kind: input, shape index: {}]
  %s2 = inlined_call_operand.vmem [shape: f32[1,256], index: 2, kind: input, shape index: {}]
  %s3 = inlined_call_operand.vmem [shape: s32[32,1], index: 3, kind: input, shape index: {}]
  %s4 = inlined_call_operand.vmem [shape: s32[32,1], index: 4, kind: input, shape index: {}]
  %s5 = inlined_call_operand.vmem [shape: f32[32,4], index: 5, kind: output, shape index: {}]
  %s6 = sld [smem:[#allocation0]]
  $region38: #{liger_lm_head_orpo_forward.1} parent=0
    _
  %s8 = ssub.s32 1, %s6
  %s9 = scalar_select 0, %s8, %s6
  // Predicated region
  $region2: #{liger_lm_head_orpo_forward.1} parent=0 // pred_check
    _
  $region3: #{liger_lm_head_orpo_forward.1} parent=0 // pred_check_branch
    %11 = sbr.rel (0) target = $region5
  $region4: #{liger_lm_head_orpo_forward.1} parent=0 // pred_region
    _
  $region5: #{liger_lm_head_orpo_forward.1} parent=0 // pred_fallthru
    _
  // Predicated region
  $region6: #{liger_lm_head_orpo_forward.1} parent=0 // pred_check
    _
  $region7: #{liger_lm_head_orpo_forward.1} parent=0 // pred_check_branch
    %13 = sbr.rel (0) target = $region9
  $region8: #{liger_lm_head_orpo_forward.1} parent=0 // pred_region
    _
  $region9: #{liger_lm_head_orpo_forward.1} parent=0 // pred_fallthru
    _
  // Predicated region
  $region10: #{liger_lm_head_orpo_forward.1} parent=0 // pred_check
    _
  $region11: #{liger_lm_head_orpo_forward.1} parent=0 // pred_check_branch
    %15 = sbr.rel (0) target = $region13
  $region12: #{liger_lm_head_orpo_forward.1} parent=0 // pred_region
    _
  $region13: #{liger_lm_head_orpo_forward.1} parent=0 // pred_fallthru
    _
  // Predicated region
  $region14: #{liger_lm_head_orpo_forward.1} parent=0 // pred_check
    _
  $region15: #{liger_lm_head_orpo_forward.1} parent=0 // pred_check_branch
    %17 = sbr.rel (0) target = $region17
  $region16: #{liger_lm_head_orpo_forward.1} parent=0 // pred_region
    _
  $region17: #{liger_lm_head_orpo_forward.1} parent=0 // pred_fallthru
    _
  // Predicated region
  $region18: #{liger_lm_head_orpo_forward.1} parent=0 // pred_check
    _
  $region19: #{liger_lm_head_orpo_forward.1} parent=0 // pred_check_branch
    %19 = sbr.rel (0) target = $region21
  $region20: #{liger_lm_head_orpo_forward.1} parent=0 // pred_region
    _
  $region21: #{liger_lm_head_orpo_forward.1} parent=0 // pred_fallthru
    _
  %p20 = scmp.eq.s32.totalorder 0, 0
  // Predicated region
  $region22: #{liger_lm_head_orpo_forward.1} parent=0 // pred_check
    %p21 = pneg %p20
  $region23: #{liger_lm_head_orpo_forward.1} parent=0 // pred_check_branch
    %23 = sbr.rel (%p21) target = $region25
  $region24: #{liger_lm_head_orpo_forward.1} parent=0 // pred_region
    %vm24 = vcmask 64512
    %25 = vst.msk [vmem:[#allocation2] sm:$0xff] %vm24, 0.0
    %26 = vst.msk [vmem:[#allocation2 + $0x8] sm:$0xff] %vm24, 0.0
    %27 = vst.msk [vmem:[#allocation2 + $0x10] sm:$0xff] %vm24, 0.0
    %28 = vst.msk [vmem:[#allocation2 + $0x18] sm:$0xff] %vm24, 0.0
    %vm29 = vcmask 7168
    %30 = vst.msk [vmem:[#allocation2] sm:$0xff] %vm29, -inf
    %31 = vst.msk [vmem:[#allocation2 + $0x8] sm:$0xff] %vm29, -inf
    %32 = vst.msk [vmem:[#allocation2 + $0x10] sm:$0xff] %vm29, -inf
    %33 = vst.msk [vmem:[#allocation2 + $0x18] sm:$0xff] %vm29, -inf
  $region25: #{liger_lm_head_orpo_forward.1} parent=0 // pred_fallthru
    _
  %v34 = vld [vmem:[%s0] sm:$0xff]
  %v35 = vld [vmem:[%s0 + $0x8] sm:$0xff]
  %v36 = vld [vmem:[%s0 + $0x10] sm:$0xff]
  %v37 = vld [vmem:[%s0 + $0x18] sm:$0xff]
  %v38 = vld [vmem:[%s1] sm:$0xff]
  %v39 = vld [vmem:[%s1 + $0x8] sm:$0xff]
  %v40 = vld [vmem:[%s1 + $0x10] sm:$0xff]
  %v41 = vld [vmem:[%s1 + $0x18] sm:$0xff]
  %v42 = vld [vmem:[%s1 + $0x20] sm:$0xff]
  %v43 = vld [vmem:[%s1 + $0x28] sm:$0xff]
  %v44 = vld [vmem:[%s1 + $0x30] sm:$0xff]
  %v45 = vld [vmem:[%s1 + $0x38] sm:$0xff]
  %v46 = vld [vmem:[%s1 + $0x40] sm:$0xff]
  %v47 = vld [vmem:[%s1 + $0x48] sm:$0xff]
  %v48 = vld [vmem:[%s1 + $0x50] sm:$0xff]
  %v49 = vld [vmem:[%s1 + $0x58] sm:$0xff]
  %v50 = vld [vmem:[%s1 + $0x60] sm:$0xff]
  %v51 = vld [vmem:[%s1 + $0x68] sm:$0xff]
  %v52 = vld [vmem:[%s1 + $0x70] sm:$0xff]
  %v53 = vld [vmem:[%s1 + $0x78] sm:$0xff]
  %v54 = vld [vmem:[%s1 + $0x80] sm:$0xff]
  %v55 = vld [vmem:[%s1 + $0x88] sm:$0xff]
  %v56 = vld [vmem:[%s1 + $0x90] sm:$0xff]
  %v57 = vld [vmem:[%s1 + $0x98] sm:$0xff]
  %v58 = vld [vmem:[%s1 + $0xa0] sm:$0xff]
  %v59 = vld [vmem:[%s1 + $0xa8] sm:$0xff]
  %v60 = vld [vmem:[%s1 + $0xb0] sm:$0xff]
  %v61 = vld [vmem:[%s1 + $0xb8] sm:$0xff]
  %v62 = vld [vmem:[%s1 + $0xc0] sm:$0xff]
  %v63 = vld [vmem:[%s1 + $0xc8] sm:$0xff]
  %v64 = vld [vmem:[%s1 + $0xd0] sm:$0xff]
  %v65 = vld [vmem:[%s1 + $0xd8] sm:$0xff]
  %v66 = vld [vmem:[%s1 + $0xe0] sm:$0xff]
  %v67 = vld [vmem:[%s1 + $0xe8] sm:$0xff]
  %v68 = vld [vmem:[%s1 + $0xf0] sm:$0xff]
  %v69 = vld [vmem:[%s1 + $0xf8] sm:$0xff]
  %vm70 = vcmask 261120
  %v72 = vsel %vm70, %v34, 0
  %v75 = vsel %vm70, %v35, 0
  %v78 = vsel %vm70, %v36, 0
  %v81 = vsel %vm70, %v37, 0
  %v84 = vsel %vm70, %v38, 0
  %v87 = vsel %vm70, %v39, 0
  %v90 = vsel %vm70, %v40, 0
  %v93 = vsel %vm70, %v41, 0
  %v96 = vsel %vm70, %v42, 0
  %v99 = vsel %vm70, %v43, 0
  %v102 = vsel %vm70, %v44, 0
  %v105 = vsel %vm70, %v45, 0
  %v108 = vsel %vm70, %v46, 0
  %v111 = vsel %vm70, %v47, 0
  %v114 = vsel %vm70, %v48, 0
  %v117 = vsel %vm70, %v49, 0
  %v120 = vsel %vm70, %v50, 0
  %v123 = vsel %vm70, %v51, 0
  %v126 = vsel %vm70, %v52, 0
  %v129 = vsel %vm70, %v53, 0
  %v132 = vsel %vm70, %v54, 0
  %v135 = vsel %vm70, %v55, 0
  %v138 = vsel %vm70, %v56, 0
  %v141 = vsel %vm70, %v57, 0
  %v144 = vsel %vm70, %v58, 0
  %v147 = vsel %vm70, %v59, 0
  %v150 = vsel %vm70, %v60, 0
  %v153 = vsel %vm70, %v61, 0
  %v156 = vsel %vm70, %v62, 0
  %v159 = vsel %vm70, %v63, 0
  %v162 = vsel %vm70, %v64, 0
  %v165 = vsel %vm70, %v65, 0
  %v168 = vsel %vm70, %v66, 0
  %v171 = vsel %vm70, %v67, 0
  %v174 = vsel %vm70, %v68, 0
  %v177 = vsel %vm70, %v69, 0
  %179 = vmatprep.subr.mxu0 0.0
  %v180 = vand.u32 %v129, 4294901760
  %181 = vmatpush1.xpose.msra.mxu0 %v180
  %182 = vmatprep.subr.mxu0 0.0
  %v183 = vand.u32 %v126, 4294901760
  %184 = vmatpush1.xpose.msra.mxu0 %v183
  %185 = vmatprep.subr.mxu0 0.0
  %v186 = vand.u32 %v123, 4294901760
  %187 = vmatpush1.xpose.msra.mxu0 %v186
  %188 = vmatprep.subr.mxu0 0.0
  %v189 = vand.u32 %v120, 4294901760
  %190 = vmatpush1.xpose.msra.mxu0 %v189
  %191 = vmatprep.subr.mxu0 0.0
  %v192 = vand.u32 %v117, 4294901760
  %193 = vmatpush1.xpose.msra.mxu0 %v192
  %194 = vmatprep.subr.mxu0 0.0
  %v195 = vand.u32 %v114, 4294901760
  %196 = vmatpush1.xpose.msra.mxu0 %v195
  %197 = vmatprep.subr.mxu0 0.0
  %v198 = vand.u32 %v111, 4294901760
  %199 = vmatpush1.xpose.msra.mxu0 %v198
  %200 = vmatprep.subr.mxu0 0.0
  %v201 = vand.u32 %v108, 4294901760
  %202 = vmatpush1.xpose.msra.mxu0 %v201
  %203 = vmatprep.subr.mxu0 0.0
  %v204 = vand.u32 %v105, 4294901760
  %205 = vmatpush1.xpose.msra.mxu0 %v204
  %206 = vmatprep.subr.mxu0 0.0
  %v207 = vand.u32 %v102, 4294901760
  %208 = vmatpush1.xpose.msra.mxu0 %v207
  %209 = vmatprep.subr.mxu0 0.0
  %v210 = vand.u32 %v99, 4294901760
  %211 = vmatpush1.xpose.msra.mxu0 %v210
  %212 = vmatprep.subr.mxu0 0.0
  %v213 = vand.u32 %v96, 4294901760
  %214 = vmatpush1.xpose.msra.mxu0 %v213
  %215 = vmatprep.subr.mxu0 0.0
  %v216 = vand.u32 %v93, 4294901760
  %217 = vmatpush1.xpose.msra.mxu0 %v216
  %218 = vmatprep.subr.mxu0 0.0
  %v219 = vand.u32 %v90, 4294901760
  %220 = vmatpush1.xpose.msra.mxu0 %v219
  %221 = vmatprep.subr.mxu0 0.0
  %v222 = vand.u32 %v87, 4294901760
  %223 = vmatpush1.xpose.msra.mxu0 %v222
  %224 = vmatprep.subr.mxu0 0.0
  %v225 = vand.u32 %v84, 4294901760
  %226 = vmatpush1.xpose.msra.mxu0 %v225
  %227 = vmatprep.subr.mxu0 0.0
  %v228 = vand.u32 %v177, 4294901760
  %229 = vmatpush2.xpose.msra.mxu0 %v228
  %230 = vmatprep.subr.mxu0 0.0
  %v231 = vand.u32 %v174, 4294901760
  %232 = vmatpush2.xpose.msra.mxu0 %v231
  %233 = vmatprep.subr.mxu0 0.0
  %v234 = vand.u32 %v171, 4294901760
  %235 = vmatpush2.xpose.msra.mxu0 %v234
  %236 = vmatprep.subr.mxu0 0.0
  %v237 = vand.u32 %v168, 4294901760
  %238 = vmatpush2.xpose.msra.mxu0 %v237
  %239 = vmatprep.subr.mxu0 0.0
  %v240 = vand.u32 %v165, 4294901760
  %241 = vmatpush2.xpose.msra.mxu0 %v240
  %242 = vmatprep.subr.mxu0 0.0
  %v243 = vand.u32 %v162, 4294901760
  %244 = vmatpush2.xpose.msra.mxu0 %v243
  %245 = vmatprep.subr.mxu0 0.0
  %v246 = vand.u32 %v159, 4294901760
  %247 = vmatpush2.xpose.msra.mxu0 %v246
  %248 = vmatprep.subr.mxu0 0.0
  %v249 = vand.u32 %v156, 4294901760
  %250 = vmatpush2.xpose.msra.mxu0 %v249
  %251 = vmatprep.subr.mxu0 0.0
  %v252 = vand.u32 %v153, 4294901760
  %253 = vmatpush2.xpose.msra.mxu0 %v252
  %254 = vmatprep.subr.mxu0 0.0
  %v255 = vand.u32 %v150, 4294901760
  %256 = vmatpush2.xpose.msra.mxu0 %v255
  %257 = vmatprep.subr.mxu0 0.0
  %v258 = vand.u32 %v147, 4294901760
  %259 = vmatpush2.xpose.msra.mxu0 %v258
  %260 = vmatprep.subr.mxu0 0.0
  %v261 = vand.u32 %v144, 4294901760
  %262 = vmatpush2.xpose.msra.mxu0 %v261
  %263 = vmatprep.subr.mxu0 0.0
  %v264 = vand.u32 %v141, 4294901760
  %265 = vmatpush2.xpose.msra.mxu0 %v264
  %266 = vmatprep.subr.mxu0 0.0
  %v267 = vand.u32 %v138, 4294901760
  %268 = vmatpush2.xpose.msra.mxu0 %v267
  %269 = vmatprep.subr.mxu0 0.0
  %v270 = vand.u32 %v135, 4294901760
  %271 = vmatpush2.xpose.msra.mxu0 %v270
  %272 = vmatprep.subr.mxu0 0.0
  %v273 = vand.u32 %v132, 4294901760
  %274 = vmatpush2.xpose.msra.mxu0 %v273
  %275 = vmatprep.mubr.f32.mxu0 0.0
  %v276 = vand.u32 %v72, 4294901760
  %v277 = vsub.f32 %v72, %v276
  %v278 = vand.u32 %v277, 4294901760
  %v279 = vsub.f32 %v277, %v278
  %v280 = vand.u32 %v279, 4294901760
  %281 = vmatmul.mubr.f32.gmra.mxu0 %v280
  %v282 = vpop.f32.mrf.mxu0
  %v283 = vadd.f32 0.0, %v282
  %v284 = vpop.f32.mrf.mxu0
  %v285 = vadd.f32 0.0, %v284
  %286 = vmatprep.mubr.f32.mxu0 0.0
  %v287 = vand.u32 %v75, 4294901760
  %v288 = vsub.f32 %v75, %v287
  %v289 = vand.u32 %v288, 4294901760
  %v290 = vsub.f32 %v288, %v289
  %v291 = vand.u32 %v290, 4294901760
  %292 = vmatmul.mubr.f32.gmra.mxu0 %v291
  %v293 = vpop.f32.mrf.mxu0
  %v294 = vadd.f32 0.0, %v293
  %v295 = vpop.f32.mrf.mxu0
  %v296 = vadd.f32 0.0, %v295
  %297 = vmatprep.mubr.f32.mxu0 0.0
  %v298 = vand.u32 %v78, 4294901760
  %v299 = vsub.f32 %v78, %v298
  %v300 = vand.u32 %v299, 4294901760
  %v301 = vsub.f32 %v299, %v300
  %v302 = vand.u32 %v301, 4294901760
  %303 = vmatmul.mubr.f32.gmra.mxu0 %v302
  %v304 = vpop.f32.mrf.mxu0
  %v305 = vadd.f32 0.0, %v304
  %v306 = vpop.f32.mrf.mxu0
  %v307 = vadd.f32 0.0, %v306
  %308 = vmatprep.mubr.f32.mxu0 0.0
  %v309 = vand.u32 %v81, 4294901760
  %v310 = vsub.f32 %v81, %v309
  %v311 = vand.u32 %v310, 4294901760
  %v312 = vsub.f32 %v310, %v311
  %v313 = vand.u32 %v312, 4294901760
  %314 = vmatmul.mubr.f32.gmra.mxu0 %v313
  %v315 = vpop.f32.mrf.mxu0
  %v316 = vadd.f32 0.0, %v315
  %v317 = vpop.f32.mrf.mxu0
  %v318 = vadd.f32 0.0, %v317
  %319 = vdwg.mxu0
  %320 = vmatprep.subr.mxu0 0.0
  %v321 = vand.u32 %v129, 4294901760
  %v322 = vsub.f32 %v129, %v321
  %v323 = vand.u32 %v322, 4294901760
  %v324 = vsub.f32 %v322, %v323
  %v325 = vand.u32 %v324, 4294901760
  %326 = vmatpush1.xpose.msra.mxu0 %v325
  %327 = vmatprep.subr.mxu0 0.0
  %v328 = vand.u32 %v126, 4294901760
  %v329 = vsub.f32 %v126, %v328
  %v330 = vand.u32 %v329, 4294901760
  %v331 = vsub.f32 %v329, %v330
  %v332 = vand.u32 %v331, 4294901760
  %333 = vmatpush1.xpose.msra.mxu0 %v332
  %334 = vmatprep.subr.mxu0 0.0
  %v335 = vand.u32 %v123, 4294901760
  %v336 = vsub.f32 %v123, %v335
  %v337 = vand.u32 %v336, 4294901760
  %v338 = vsub.f32 %v336, %v337
  %v339 = vand.u32 %v338, 4294901760
  %340 = vmatpush1.xpose.msra.mxu0 %v339
  %341 = vmatprep.subr.mxu0 0.0
  %v342 = vand.u32 %v120, 4294901760
  %v343 = vsub.f32 %v120, %v342
  %v344 = vand.u32 %v343, 4294901760
  %v345 = vsub.f32 %v343, %v344
  %v346 = vand.u32 %v345, 4294901760
  %347 = vmatpush1.xpose.msra.mxu0 %v346
  %348 = vmatprep.subr.mxu0 0.0
  %v349 = vand.u32 %v117, 4294901760
  %v350 = vsub.f32 %v117, %v349
  %v351 = vand.u32 %v350, 4294901760
  %v352 = vsub.f32 %v350, %v351
  %v353 = vand.u32 %v352, 4294901760
  %354 = vmatpush1.xpose.msra.mxu0 %v353
  %355 = vmatprep.subr.mxu0 0.0
  %v356 = vand.u32 %v114, 4294901760
  %v357 = vsub.f32 %v114, %v356
  %v358 = vand.u32 %v357, 4294901760
  %v359 = vsub.f32 %v357, %v358
  %v360 = vand.u32 %v359, 4294901760
  %361 = vmatpush1.xpose.msra.mxu0 %v360
  %362 = vmatprep.subr.mxu0 0.0
  %v363 = vand.u32 %v111, 4294901760
  %v364 = vsub.f32 %v111, %v363
  %v365 = vand.u32 %v364, 4294901760
  %v366 = vsub.f32 %v364, %v365
  %v367 = vand.u32 %v366, 4294901760
  %368 = vmatpush1.xpose.msra.mxu0 %v367
  %369 = vmatprep.subr.mxu0 0.0
  %v370 = vand.u32 %v108, 4294901760
  %v371 = vsub.f32 %v108, %v370
  %v372 = vand.u32 %v371, 4294901760
  %v373 = vsub.f32 %v371, %v372
  %v374 = vand.u32 %v373, 4294901760
  %375 = vmatpush1.xpose.msra.mxu0 %v374
  %376 = vmatprep.subr.mxu0 0.0
  %v377 = vand.u32 %v105, 4294901760
  %v378 = vsub.f32 %v105, %v377
  %v379 = vand.u32 %v378, 4294901760
  %v380 = vsub.f32 %v378, %v379
  %v381 = vand.u32 %v380, 4294901760
  %382 = vmatpush1.xpose.msra.mxu0 %v381
  %383 = vmatprep.subr.mxu0 0.0
  %v384 = vand.u32 %v102, 4294901760
  %v385 = vsub.f32 %v102, %v384
  %v386 = vand.u32 %v385, 4294901760
  %v387 = vsub.f32 %v385, %v386
  %v388 = vand.u32 %v387, 4294901760
  %389 = vmatpush1.xpose.msra.mxu0 %v388
  %390 = vmatprep.subr.mxu0 0.0
  %v391 = vand.u32 %v99, 4294901760
  %v392 = vsub.f32 %v99, %v391
  %v393 = vand.u32 %v392, 4294901760
  %v394 = vsub.f32 %v392, %v393
  %v395 = vand.u32 %v394, 4294901760
  %396 = vmatpush1.xpose.msra.mxu0 %v395
  %397 = vmatprep.subr.mxu0 0.0
  %v398 = vand.u32 %v96, 4294901760
  %v399 = vsub.f32 %v96, %v398
  %v400 = vand.u32 %v399, 4294901760
  %v401 = vsub.f32 %v399, %v400
  %v402 = vand.u32 %v401, 4294901760
  %403 = vmatpush1.xpose.msra.mxu0 %v402
  %404 = vmatprep.subr.mxu0 0.0
  %v405 = vand.u32 %v93, 4294901760
  %v406 = vsub.f32 %v93, %v405
  %v407 = vand.u32 %v406, 4294901760
  %v408 = vsub.f32 %v406, %v407
  %v409 = vand.u32 %v408, 4294901760
  %410 = vmatpush1.xpose.msra.mxu0 %v409
  %411 = vmatprep.subr.mxu0 0.0
  %v412 = vand.u32 %v90, 4294901760
  %v413 = vsub.f32 %v90, %v412
  %v414 = vand.u32 %v413, 4294901760
  %v415 = vsub.f32 %v413, %v414
  %v416 = vand.u32 %v415, 4294901760
  %417 = vmatpush1.xpose.msra.mxu0 %v416
  %418 = vmatprep.subr.mxu0 0.0
  %v419 = vand.u32 %v87, 4294901760
  %v420 = vsub.f32 %v87, %v419
  %v421 = vand.u32 %v420, 4294901760
  %v422 = vsub.f32 %v420, %v421
  %v423 = vand.u32 %v422, 4294901760
  %424 = vmatpush1.xpose.msra.mxu0 %v423
  %425 = vmatprep.subr.mxu0 0.0
  %v426 = vand.u32 %v84, 4294901760
  %v427 = vsub.f32 %v84, %v426
  %v428 = vand.u32 %v427, 4294901760
  %v429 = vsub.f32 %v427, %v428
  %v430 = vand.u32 %v429, 4294901760
  %431 = vmatpush1.xpose.msra.mxu0 %v430
  %432 = vmatprep.subr.mxu0 0.0
  %v433 = vand.u32 %v177, 4294901760
  %v434 = vsub.f32 %v177, %v433
  %v435 = vand.u32 %v434, 4294901760
  %v436 = vsub.f32 %v434, %v435
  %v437 = vand.u32 %v436, 4294901760
  %438 = vmatpush2.xpose.msra.mxu0 %v437
  %439 = vmatprep.subr.mxu0 0.0
  %v440 = vand.u32 %v174, 4294901760
  %v441 = vsub.f32 %v174, %v440
  %v442 = vand.u32 %v441, 4294901760
  %v443 = vsub.f32 %v441, %v442
  %v444 = vand.u32 %v443, 4294901760
  %445 = vmatpush2.xpose.msra.mxu0 %v444
  %446 = vmatprep.subr.mxu0 0.0
  %v447 = vand.u32 %v171, 4294901760
  %v448 = vsub.f32 %v171, %v447
  %v449 = vand.u32 %v448, 4294901760
  %v450 = vsub.f32 %v448, %v449
  %v451 = vand.u32 %v450, 4294901760
  %452 = vmatpush2.xpose.msra.mxu0 %v451
  %453 = vmatprep.subr.mxu0 0.0
  %v454 = vand.u32 %v168, 4294901760
  %v455 = vsub.f32 %v168, %v454
  %v456 = vand.u32 %v455, 4294901760
  %v457 = vsub.f32 %v455, %v456
  %v458 = vand.u32 %v457, 4294901760
  %459 = vmatpush2.xpose.msra.mxu0 %v458
  %460 = vmatprep.subr.mxu0 0.0
  %v461 = vand.u32 %v165, 4294901760
  %v462 = vsub.f32 %v165, %v461
  %v463 = vand.u32 %v462, 4294901760
  %v464 = vsub.f32 %v462, %v463
  %v465 = vand.u32 %v464, 4294901760
  %466 = vmatpush2.xpose.msra.mxu0 %v465
  %467 = vmatprep.subr.mxu0 0.0
  %v468 = vand.u32 %v162, 4294901760
  %v469 = vsub.f32 %v162, %v468
  %v470 = vand.u32 %v469, 4294901760
  %v471 = vsub.f32 %v469, %v470
  %v472 = vand.u32 %v471, 4294901760
  %473 = vmatpush2.xpose.msra.mxu0 %v472
  %474 = vmatprep.subr.mxu0 0.0
  %v475 = vand.u32 %v159, 4294901760
  %v476 = vsub.f32 %v159, %v475
  %v477 = vand.u32 %v476, 4294901760
  %v478 = vsub.f32 %v476, %v477
  %v479 = vand.u32 %v478, 4294901760
  %480 = vmatpush2.xpose.msra.mxu0 %v479
  %481 = vmatprep.subr.mxu0 0.0
  %v482 = vand.u32 %v156, 4294901760
  %v483 = vsub.f32 %v156, %v482
  %v484 = vand.u32 %v483, 4294901760
  %v485 = vsub.f32 %v483, %v484
  %v486 = vand.u32 %v485, 4294901760
  %487 = vmatpush2.xpose.msra.mxu0 %v486
  %488 = vmatprep.subr.mxu0 0.0
  %v489 = vand.u32 %v153, 4294901760
  %v490 = vsub.f32 %v153, %v489
  %v491 = vand.u32 %v490, 4294901760
  %v492 = vsub.f32 %v490, %v491
  %v493 = vand.u32 %v492, 4294901760
  %494 = vmatpush2.xpose.msra.mxu0 %v493
  %495 = vmatprep.subr.mxu0 0.0
  %v496 = vand.u32 %v150, 4294901760
  %v497 = vsub.f32 %v150, %v496
  %v498 = vand.u32 %v497, 4294901760
  %v499 = vsub.f32 %v497, %v498
  %v500 = vand.u32 %v499, 4294901760
  %501 = vmatpush2.xpose.msra.mxu0 %v500
  %502 = vmatprep.subr.mxu0 0.0
  %v503 = vand.u32 %v147, 4294901760
  %v504 = vsub.f32 %v147, %v503
  %v505 = vand.u32 %v504, 4294901760
  %v506 = vsub.f32 %v504, %v505
  %v507 = vand.u32 %v506, 4294901760
  %508 = vmatpush2.xpose.msra.mxu0 %v507
  %509 = vmatprep.subr.mxu0 0.0
  %v510 = vand.u32 %v144, 4294901760
  %v511 = vsub.f32 %v144, %v510
  %v512 = vand.u32 %v511, 4294901760
  %v513 = vsub.f32 %v511, %v512
  %v514 = vand.u32 %v513, 4294901760
  %515 = vmatpush2.xpose.msra.mxu0 %v514
  %516 = vmatprep.subr.mxu0 0.0
  %v517 = vand.u32 %v141, 4294901760
  %v518 = vsub.f32 %v141, %v517
  %v519 = vand.u32 %v518, 4294901760
  %v520 = vsub.f32 %v518, %v519
  %v521 = vand.u32 %v520, 4294901760
  %522 = vmatpush2.xpose.msra.mxu0 %v521
  %523 = vmatprep.subr.mxu0 0.0
  %v524 = vand.u32 %v138, 4294901760
  %v525 = vsub.f32 %v138, %v524
  %v526 = vand.u32 %v525, 4294901760
  %v527 = vsub.f32 %v525, %v526
  %v528 = vand.u32 %v527, 4294901760
  %529 = vmatpush2.xpose.msra.mxu0 %v528
  %530 = vmatprep.subr.mxu0 0.0
  %v531 = vand.u32 %v135, 4294901760
  %v532 = vsub.f32 %v135, %v531
  %v533 = vand.u32 %v532, 4294901760
  %v534 = vsub.f32 %v532, %v533
  %v535 = vand.u32 %v534, 4294901760
  %536 = vmatpush2.xpose.msra.mxu0 %v535
  %537 = vmatprep.subr.mxu0 0.0
  %v538 = vand.u32 %v132, 4294901760
  %v539 = vsub.f32 %v132, %v538
  %v540 = vand.u32 %v539, 4294901760
  %v541 = vsub.f32 %v539, %v540
  %v542 = vand.u32 %v541, 4294901760
  %543 = vmatpush2.xpose.msra.mxu0 %v542
  %544 = vmatprep.mubr.f32.mxu0 0.0
  %v545 = vand.u32 %v72, 4294901760
  %546 = vmatmul.mubr.f32.gmra.mxu0 %v545
  %v547 = vpop.f32.mrf.mxu0
  %v548 = vadd.f32 %v283, %v547
  %v549 = vpop.f32.mrf.mxu0
  %v550 = vadd.f32 %v285, %v549
  %551 = vmatprep.mubr.f32.mxu0 0.0
  %v552 = vand.u32 %v75, 4294901760
  %553 = vmatmul.mubr.f32.gmra.mxu0 %v552
  %v554 = vpop.f32.mrf.mxu0
  %v555 = vadd.f32 %v294, %v554
  %v556 = vpop.f32.mrf.mxu0
  %v557 = vadd.f32 %v296, %v556
  %558 = vmatprep.mubr.f32.mxu0 0.0
  %v559 = vand.u32 %v78, 4294901760
  %560 = vmatmul.mubr.f32.gmra.mxu0 %v559
  %v561 = vpop.f32.mrf.mxu0
  %v562 = vadd.f32 %v305, %v561
  %v563 = vpop.f32.mrf.mxu0
  %v564 = vadd.f32 %v307, %v563
  %565 = vmatprep.mubr.f32.mxu0 0.0
  %v566 = vand.u32 %v81, 4294901760
  %567 = vmatmul.mubr.f32.gmra.mxu0 %v566
  %v568 = vpop.f32.mrf.mxu0
  %v569 = vadd.f32 %v316, %v568
  %v570 = vpop.f32.mrf.mxu0
  %v571 = vadd.f32 %v318, %v570
  %572 = vdwg.mxu0
  %573 = vmatprep.subr.mxu0 0.0
  %v574 = vand.u32 %v129, 4294901760
  %v575 = vsub.f32 %v129, %v574
  %576 = vmatpush1.xpose.msra.mxu0 %v575
  %577 = vmatprep.subr.mxu0 0.0
  %v578 = vand.u32 %v126, 4294901760
  %v579 = vsub.f32 %v126, %v578
  %580 = vmatpush1.xpose.msra.mxu0 %v579
  %581 = vmatprep.subr.mxu0 0.0
  %v582 = vand.u32 %v123, 4294901760
  %v583 = vsub.f32 %v123, %v582
  %584 = vmatpush1.xpose.msra.mxu0 %v583
  %585 = vmatprep.subr.mxu0 0.0
  %v586 = vand.u32 %v120, 4294901760
  %v587 = vsub.f32 %v120, %v586
  %588 = vmatpush1.xpose.msra.mxu0 %v587
  %589 = vmatprep.subr.mxu0 0.0
  %v590 = vand.u32 %v117, 4294901760
  %v591 = vsub.f32 %v117, %v590
  %592 = vmatpush1.xpose.msra.mxu0 %v591
  %593 = vmatprep.subr.mxu0 0.0
  %v594 = vand.u32 %v114, 4294901760
  %v595 = vsub.f32 %v114, %v594
  %596 = vmatpush1.xpose.msra.mxu0 %v595
  %597 = vmatprep.subr.mxu0 0.0
  %v598 = vand.u32 %v111, 4294901760
  %v599 = vsub.f32 %v111, %v598
  %600 = vmatpush1.xpose.msra.mxu0 %v599
  %601 = vmatprep.subr.mxu0 0.0
  %v602 = vand.u32 %v108, 4294901760
  %v603 = vsub.f32 %v108, %v602
  %604 = vmatpush1.xpose.msra.mxu0 %v603
  %605 = vmatprep.subr.mxu0 0.0
  %v606 = vand.u32 %v105, 4294901760
  %v607 = vsub.f32 %v105, %v606
  %608 = vmatpush1.xpose.msra.mxu0 %v607
  %609 = vmatprep.subr.mxu0 0.0
  %v610 = vand.u32 %v102, 4294901760
  %v611 = vsub.f32 %v102, %v610
  %612 = vmatpush1.xpose.msra.mxu0 %v611
  %613 = vmatprep.subr.mxu0 0.0
  %v614 = vand.u32 %v99, 4294901760
  %v615 = vsub.f32 %v99, %v614
  %616 = vmatpush1.xpose.msra.mxu0 %v615
  %617 = vmatprep.subr.mxu0 0.0
  %v618 = vand.u32 %v96, 4294901760
  %v619 = vsub.f32 %v96, %v618
  %620 = vmatpush1.xpose.msra.mxu0 %v619
  %621 = vmatprep.subr.mxu0 0.0
  %v622 = vand.u32 %v93, 4294901760
  %v623 = vsub.f32 %v93, %v622
  %624 = vmatpush1.xpose.msra.mxu0 %v623
  %625 = vmatprep.subr.mxu0 0.0
  %v626 = vand.u32 %v90, 4294901760
  %v627 = vsub.f32 %v90, %v626
  %628 = vmatpush1.xpose.msra.mxu0 %v627
  %629 = vmatprep.subr.mxu0 0.0
  %v630 = vand.u32 %v87, 4294901760
  %v631 = vsub.f32 %v87, %v630
  %632 = vmatpush1.xpose.msra.mxu0 %v631
  %633 = vmatprep.subr.mxu0 0.0
  %v634 = vand.u32 %v84, 4294901760
  %v635 = vsub.f32 %v84, %v634
  %636 = vmatpush1.xpose.msra.mxu0 %v635
  %637 = vmatprep.subr.mxu0 0.0
  %v638 = vand.u32 %v177, 4294901760
  %v639 = vsub.f32 %v177, %v638
  %640 = vmatpush2.xpose.msra.mxu0 %v639
  %641 = vmatprep.subr.mxu0 0.0
  %v642 = vand.u32 %v174, 4294901760
  %v643 = vsub.f32 %v174, %v642
  %644 = vmatpush2.xpose.msra.mxu0 %v643
  %645 = vmatprep.subr.mxu0 0.0
  %v646 = vand.u32 %v171, 4294901760
  %v647 = vsub.f32 %v171, %v646
  %648 = vmatpush2.xpose.msra.mxu0 %v647
  %649 = vmatprep.subr.mxu0 0.0
  %v650 = vand.u32 %v168, 4294901760
  %v651 = vsub.f32 %v168, %v650
  %652 = vmatpush2.xpose.msra.mxu0 %v651
  %653 = vmatprep.subr.mxu0 0.0
  %v654 = vand.u32 %v165, 4294901760
  %v655 = vsub.f32 %v165, %v654
  %656 = vmatpush2.xpose.msra.mxu0 %v655
  %657 = vmatprep.subr.mxu0 0.0
  %v658 = vand.u32 %v162, 4294901760
  %v659 = vsub.f32 %v162, %v658
  %660 = vmatpush2.xpose.msra.mxu0 %v659
  %661 = vmatprep.subr.mxu0 0.0
  %v662 = vand.u32 %v159, 4294901760
  %v663 = vsub.f32 %v159, %v662
  %664 = vmatpush2.xpose.msra.mxu0 %v663
  %665 = vmatprep.subr.mxu0 0.0
  %v666 = vand.u32 %v156, 4294901760
  %v667 = vsub.f32 %v156, %v666
  %668 = vmatpush2.xpose.msra.mxu0 %v667
  %669 = vmatprep.subr.mxu0 0.0
  %v670 = vand.u32 %v153, 4294901760
  %v671 = vsub.f32 %v153, %v670
  %672 = vmatpush2.xpose.msra.mxu0 %v671
  %673 = vmatprep.subr.mxu0 0.0
  %v674 = vand.u32 %v150, 4294901760
  %v675 = vsub.f32 %v150, %v674
  %676 = vmatpush2.xpose.msra.mxu0 %v675
  %677 = vmatprep.subr.mxu0 0.0
  %v678 = vand.u32 %v147, 4294901760
  %v679 = vsub.f32 %v147, %v678
  %680 = vmatpush2.xpose.msra.mxu0 %v679
  %681 = vmatprep.subr.mxu0 0.0
  %v682 = vand.u32 %v144, 4294901760
  %v683 = vsub.f32 %v144, %v682
  %684 = vmatpush2.xpose.msra.mxu0 %v683
  %685 = vmatprep.subr.mxu0 0.0
  %v686 = vand.u32 %v141, 4294901760
  %v687 = vsub.f32 %v141, %v686
  %688 = vmatpush2.xpose.msra.mxu0 %v687
  %689 = vmatprep.subr.mxu0 0.0
  %v690 = vand.u32 %v138, 4294901760
  %v691 = vsub.f32 %v138, %v690
  %692 = vmatpush2.xpose.msra.mxu0 %v691
  %693 = vmatprep.subr.mxu0 0.0
  %v694 = vand.u32 %v135, 4294901760
  %v695 = vsub.f32 %v135, %v694
  %696 = vmatpush2.xpose.msra.mxu0 %v695
  %697 = vmatprep.subr.mxu0 0.0
  %v698 = vand.u32 %v132, 4294901760
  %v699 = vsub.f32 %v132, %v698
  %700 = vmatpush2.xpose.msra.mxu0 %v699
  %701 = vmatprep.mubr.f32.mxu0 0.0
  %v702 = vand.u32 %v72, 4294901760
  %v703 = vsub.f32 %v72, %v702
  %704 = vmatmul.mubr.f32.gmra.mxu0 %v703
  %v705 = vpop.f32.mrf.mxu0
  %v706 = vadd.f32 %v548, %v705
  %v707 = vpop.f32.mrf.mxu0
  %v708 = vadd.f32 %v550, %v707
  %709 = vmatprep.mubr.f32.mxu0 0.0
  %v710 = vand.u32 %v75, 4294901760
  %v711 = vsub.f32 %v75, %v710
  %712 = vmatmul.mubr.f32.gmra.mxu0 %v711
  %v713 = vpop.f32.mrf.mxu0
  %v714 = vadd.f32 %v555, %v713
  %v715 = vpop.f32.mrf.mxu0
  %v716 = vadd.f32 %v557, %v715
  %717 = vmatprep.mubr.f32.mxu0 0.0
  %v718 = vand.u32 %v78, 4294901760
  %v719 = vsub.f32 %v78, %v718
  %720 = vmatmul.mubr.f32.gmra.mxu0 %v719
  %v721 = vpop.f32.mrf.mxu0
  %v722 = vadd.f32 %v562, %v721
  %v723 = vpop.f32.mrf.mxu0
  %v724 = vadd.f32 %v564, %v723
  %725 = vmatprep.mubr.f32.mxu0 0.0
  %v726 = vand.u32 %v81, 4294901760
  %v727 = vsub.f32 %v81, %v726
  %728 = vmatmul.mubr.f32.gmra.mxu0 %v727
  %v729 = vpop.f32.mrf.mxu0
  %v730 = vadd.f32 %v569, %v729
  %v731 = vpop.f32.mrf.mxu0
  %v732 = vadd.f32 %v571, %v731
  %733 = vdwg.mxu0
  %734 = vmatprep.subr.mxu0 0.0
  %v735 = vand.u32 %v129, 4294901760
  %736 = vmatpush1.xpose.msra.mxu0 %v735
  %737 = vmatprep.subr.mxu0 0.0
  %v738 = vand.u32 %v126, 4294901760
  %739 = vmatpush1.xpose.msra.mxu0 %v738
  %740 = vmatprep.subr.mxu0 0.0
  %v741 = vand.u32 %v123, 4294901760
  %742 = vmatpush1.xpose.msra.mxu0 %v741
  %743 = vmatprep.subr.mxu0 0.0
  %v744 = vand.u32 %v120, 4294901760
  %745 = vmatpush1.xpose.msra.mxu0 %v744
  %746 = vmatprep.subr.mxu0 0.0
  %v747 = vand.u32 %v117, 4294901760
  %748 = vmatpush1.xpose.msra.mxu0 %v747
  %749 = vmatprep.subr.mxu0 0.0
  %v750 = vand.u32 %v114, 4294901760
  %751 = vmatpush1.xpose.msra.mxu0 %v750
  %752 = vmatprep.subr.mxu0 0.0
  %v753 = vand.u32 %v111, 4294901760
  %754 = vmatpush1.xpose.msra.mxu0 %v753
  %755 = vmatprep.subr.mxu0 0.0
  %v756 = vand.u32 %v108, 4294901760
  %757 = vmatpush1.xpose.msra.mxu0 %v756
  %758 = vmatprep.subr.mxu0 0.0
  %v759 = vand.u32 %v105, 4294901760
  %760 = vmatpush1.xpose.msra.mxu0 %v759
  %761 = vmatprep.subr.mxu0 0.0
  %v762 = vand.u32 %v102, 4294901760
  %763 = vmatpush1.xpose.msra.mxu0 %v762
  %764 = vmatprep.subr.mxu0 0.0
  %v765 = vand.u32 %v99, 4294901760
  %766 = vmatpush1.xpose.msra.mxu0 %v765
  %767 = vmatprep.subr.mxu0 0.0
  %v768 = vand.u32 %v96, 4294901760
  %769 = vmatpush1.xpose.msra.mxu0 %v768
  %770 = vmatprep.subr.mxu0 0.0
  %v771 = vand.u32 %v93, 4294901760
  %772 = vmatpush1.xpose.msra.mxu0 %v771
  %773 = vmatprep.subr.mxu0 0.0
  %v774 = vand.u32 %v90, 4294901760
  %775 = vmatpush1.xpose.msra.mxu0 %v774
  %776 = vmatprep.subr.mxu0 0.0
  %v777 = vand.u32 %v87, 4294901760
  %778 = vmatpush1.xpose.msra.mxu0 %v777
  %779 = vmatprep.subr.mxu0 0.0
  %v780 = vand.u32 %v84, 4294901760
  %781 = vmatpush1.xpose.msra.mxu0 %v780
  %782 = vmatprep.subr.mxu0 0.0
  %v783 = vand.u32 %v177, 4294901760
  %784 = vmatpush2.xpose.msra.mxu0 %v783
  %785 = vmatprep.subr.mxu0 0.0
  %v786 = vand.u32 %v174, 4294901760
  %787 = vmatpush2.xpose.msra.mxu0 %v786
  %788 = vmatprep.subr.mxu0 0.0
  %v789 = vand.u32 %v171, 4294901760
  %790 = vmatpush2.xpose.msra.mxu0 %v789
  %791 = vmatprep.subr.mxu0 0.0
  %v792 = vand.u32 %v168, 4294901760
  %793 = vmatpush2.xpose.msra.mxu0 %v792
  %794 = vmatprep.subr.mxu0 0.0
  %v795 = vand.u32 %v165, 4294901760
  %796 = vmatpush2.xpose.msra.mxu0 %v795
  %797 = vmatprep.subr.mxu0 0.0
  %v798 = vand.u32 %v162, 4294901760
  %799 = vmatpush2.xpose.msra.mxu0 %v798
  %800 = vmatprep.subr.mxu0 0.0
  %v801 = vand.u32 %v159, 4294901760
  %802 = vmatpush2.xpose.msra.mxu0 %v801
  %803 = vmatprep.subr.mxu0 0.0
  %v804 = vand.u32 %v156, 4294901760
  %805 = vmatpush2.xpose.msra.mxu0 %v804
  %806 = vmatprep.subr.mxu0 0.0
  %v807 = vand.u32 %v153, 4294901760
  %808 = vmatpush2.xpose.msra.mxu0 %v807
  %809 = vmatprep.subr.mxu0 0.0
  %v810 = vand.u32 %v150, 4294901760
  %811 = vmatpush2.xpose.msra.mxu0 %v810
  %812 = vmatprep.subr.mxu0 0.0
  %v813 = vand.u32 %v147, 4294901760
  %814 = vmatpush2.xpose.msra.mxu0 %v813
  %815 = vmatprep.subr.mxu0 0.0
  %v816 = vand.u32 %v144, 4294901760
  %817 = vmatpush2.xpose.msra.mxu0 %v816
  %818 = vmatprep.subr.mxu0 0.0
  %v819 = vand.u32 %v141, 4294901760
  %820 = vmatpush2.xpose.msra.mxu0 %v819
  %821 = vmatprep.subr.mxu0 0.0
  %v822 = vand.u32 %v138, 4294901760
  %823 = vmatpush2.xpose.msra.mxu0 %v822
  %824 = vmatprep.subr.mxu0 0.0
  %v825 = vand.u32 %v135, 4294901760
  %826 = vmatpush2.xpose.msra.mxu0 %v825
  %827 = vmatprep.subr.mxu0 0.0
  %v828 = vand.u32 %v132, 4294901760
  %829 = vmatpush2.xpose.msra.mxu0 %v828
  %830 = vmatprep.mubr.f32.mxu0 0.0
  %v831 = vand.u32 %v72, 4294901760
  %v832 = vsub.f32 %v72, %v831
  %v833 = vand.u32 %v832, 4294901760
  %834 = vmatmul.mubr.f32.gmra.mxu0 %v833
  %v835 = vpop.f32.mrf.mxu0
  %v836 = vadd.f32 %v706, %v835
  %v837 = vpop.f32.mrf.mxu0
  %v838 = vadd.f32 %v708, %v837
  %839 = vmatprep.mubr.f32.mxu0 0.0
  %v840 = vand.u32 %v75, 4294901760
  %v841 = vsub.f32 %v75, %v840
  %v842 = vand.u32 %v841, 4294901760
  %843 = vmatmul.mubr.f32.gmra.mxu0 %v842
  %v844 = vpop.f32.mrf.mxu0
  %v845 = vadd.f32 %v714, %v844
  %v846 = vpop.f32.mrf.mxu0
  %v847 = vadd.f32 %v716, %v846
  %848 = vmatprep.mubr.f32.mxu0 0.0
  %v849 = vand.u32 %v78, 4294901760
  %v850 = vsub.f32 %v78, %v849
  %v851 = vand.u32 %v850, 4294901760
  %852 = vmatmul.mubr.f32.gmra.mxu0 %v851
  %v853 = vpop.f32.mrf.mxu0
  %v854 = vadd.f32 %v722, %v853
  %v855 = vpop.f32.mrf.mxu0
  %v856 = vadd.f32 %v724, %v855
  %857 = vmatprep.mubr.f32.mxu0 0.0
  %v858 = vand.u32 %v81, 4294901760
  %v859 = vsub.f32 %v81, %v858
  %v860 = vand.u32 %v859, 4294901760
  %861 = vmatmul.mubr.f32.gmra.mxu0 %v860
  %v862 = vpop.f32.mrf.mxu0
  %v863 = vadd.f32 %v730, %v862
  %v864 = vpop.f32.mrf.mxu0
  %v865 = vadd.f32 %v732, %v864
  %866 = vdwg.mxu0
  %867 = vmatprep.subr.mxu0 0.0
  %v868 = vand.u32 %v129, 4294901760
  %v869 = vsub.f32 %v129, %v868
  %v870 = vand.u32 %v869, 4294901760
  %871 = vmatpush1.xpose.msra.mxu0 %v870
  %872 = vmatprep.subr.mxu0 0.0
  %v873 = vand.u32 %v126, 4294901760
  %v874 = vsub.f32 %v126, %v873
  %v875 = vand.u32 %v874, 4294901760
  %876 = vmatpush1.xpose.msra.mxu0 %v875
  %877 = vmatprep.subr.mxu0 0.0
  %v878 = vand.u32 %v123, 4294901760
  %v879 = vsub.f32 %v123, %v878
  %v880 = vand.u32 %v879, 4294901760
  %881 = vmatpush1.xpose.msra.mxu0 %v880
  %882 = vmatprep.subr.mxu0 0.0
  %v883 = vand.u32 %v120, 4294901760
  %v884 = vsub.f32 %v120, %v883
  %v885 = vand.u32 %v884, 4294901760
  %886 = vmatpush1.xpose.msra.mxu0 %v885
  %887 = vmatprep.subr.mxu0 0.0
  %v888 = vand.u32 %v117, 4294901760
  %v889 = vsub.f32 %v117, %v888
  %v890 = vand.u32 %v889, 4294901760
  %891 = vmatpush1.xpose.msra.mxu0 %v890
  %892 = vmatprep.subr.mxu0 0.0
  %v893 = vand.u32 %v114, 4294901760
  %v894 = vsub.f32 %v114, %v893
  %v895 = vand.u32 %v894, 4294901760
  %896 = vmatpush1.xpose.msra.mxu0 %v895
  %897 = vmatprep.subr.mxu0 0.0
  %v898 = vand.u32 %v111, 4294901760
  %v899 = vsub.f32 %v111, %v898
  %v900 = vand.u32 %v899, 4294901760
  %901 = vmatpush1.xpose.msra.mxu0 %v900
  %902 = vmatprep.subr.mxu0 0.0
  %v903 = vand.u32 %v108, 4294901760
  %v904 = vsub.f32 %v108, %v903
  %v905 = vand.u32 %v904, 4294901760
  %906 = vmatpush1.xpose.msra.mxu0 %v905
  %907 = vmatprep.subr.mxu0 0.0
  %v908 = vand.u32 %v105, 4294901760
  %v909 = vsub.f32 %v105, %v908
  %v910 = vand.u32 %v909, 4294901760
  %911 = vmatpush1.xpose.msra.mxu0 %v910
  %912 = vmatprep.subr.mxu0 0.0
  %v913 = vand.u32 %v102, 4294901760
  %v914 = vsub.f32 %v102, %v913
  %v915 = vand.u32 %v914, 4294901760
  %916 = vmatpush1.xpose.msra.mxu0 %v915
  %917 = vmatprep.subr.mxu0 0.0
  %v918 = vand.u32 %v99, 4294901760
  %v919 = vsub.f32 %v99, %v918
  %v920 = vand.u32 %v919, 4294901760
  %921 = vmatpush1.xpose.msra.mxu0 %v920
  %922 = vmatprep.subr.mxu0 0.0
  %v923 = vand.u32 %v96, 4294901760
  %v924 = vsub.f32 %v96, %v923
  %v925 = vand.u32 %v924, 4294901760
  %926 = vmatpush1.xpose.msra.mxu0 %v925
  %927 = vmatprep.subr.mxu0 0.0
  %v928 = vand.u32 %v93, 4294901760
  %v929 = vsub.f32 %v93, %v928
  %v930 = vand.u32 %v929, 4294901760
  %931 = vmatpush1.xpose.msra.mxu0 %v930
  %932 = vmatprep.subr.mxu0 0.0
  %v933 = vand.u32 %v90, 4294901760
  %v934 = vsub.f32 %v90, %v933
  %v935 = vand.u32 %v934, 4294901760
  %936 = vmatpush1.xpose.msra.mxu0 %v935
  %937 = vmatprep.subr.mxu0 0.0
  %v938 = vand.u32 %v87, 4294901760
  %v939 = vsub.f32 %v87, %v938
  %v940 = vand.u32 %v939, 4294901760
  %941 = vmatpush1.xpose.msra.mxu0 %v940
  %942 = vmatprep.subr.mxu0 0.0
  %v943 = vand.u32 %v84, 4294901760
  %v944 = vsub.f32 %v84, %v943
  %v945 = vand.u32 %v944, 4294901760
  %946 = vmatpush1.xpose.msra.mxu0 %v945
  %947 = vmatprep.subr.mxu0 0.0
  %v948 = vand.u32 %v177, 4294901760
  %v949 = vsub.f32 %v177, %v948
  %v950 = vand.u32 %v949, 4294901760
  %951 = vmatpush2.xpose.msra.mxu0 %v950
  %952 = vmatprep.subr.mxu0 0.0
  %v953 = vand.u32 %v174, 4294901760
  %v954 = vsub.f32 %v174, %v953
  %v955 = vand.u32 %v954, 4294901760
  %956 = vmatpush2.xpose.msra.mxu0 %v955
  %957 = vmatprep.subr.mxu0 0.0
  %v958 = vand.u32 %v171, 4294901760
  %v959 = vsub.f32 %v171, %v958
  %v960 = vand.u32 %v959, 4294901760
  %961 = vmatpush2.xpose.msra.mxu0 %v960
  %962 = vmatprep.subr.mxu0 0.0
  %v963 = vand.u32 %v168, 4294901760
  %v964 = vsub.f32 %v168, %v963
  %v965 = vand.u32 %v964, 4294901760
  %966 = vmatpush2.xpose.msra.mxu0 %v965
  %967 = vmatprep.subr.mxu0 0.0
  %v968 = vand.u32 %v165, 4294901760
  %v969 = vsub.f32 %v165, %v968
  %v970 = vand.u32 %v969, 4294901760
  %971 = vmatpush2.xpose.msra.mxu0 %v970
  %972 = vmatprep.subr.mxu0 0.0
  %v973 = vand.u32 %v162, 4294901760
  %v974 = vsub.f32 %v162, %v973
  %v975 = vand.u32 %v974, 4294901760
  %976 = vmatpush2.xpose.msra.mxu0 %v975
  %977 = vmatprep.subr.mxu0 0.0
  %v978 = vand.u32 %v159, 4294901760
  %v979 = vsub.f32 %v159, %v978
  %v980 = vand.u32 %v979, 4294901760
  %981 = vmatpush2.xpose.msra.mxu0 %v980
  %982 = vmatprep.subr.mxu0 0.0
  %v983 = vand.u32 %v156, 4294901760
  %v984 = vsub.f32 %v156, %v983
  %v985 = vand.u32 %v984, 4294901760
  %986 = vmatpush2.xpose.msra.mxu0 %v985
  %987 = vmatprep.subr.mxu0 0.0
  %v988 = vand.u32 %v153, 4294901760
  %v989 = vsub.f32 %v153, %v988
  %v990 = vand.u32 %v989, 4294901760
  %991 = vmatpush2.xpose.msra.mxu0 %v990
  %992 = vmatprep.subr.mxu0 0.0
  %v993 = vand.u32 %v150, 4294901760
  %v994 = vsub.f32 %v150, %v993
  %v995 = vand.u32 %v994, 4294901760
  %996 = vmatpush2.xpose.msra.mxu0 %v995
  %997 = vmatprep.subr.mxu0 0.0
  %v998 = vand.u32 %v147, 4294901760
  %v999 = vsub.f32 %v147, %v998
  %v1000 = vand.u32 %v999, 4294901760
  %1001 = vmatpush2.xpose.msra.mxu0 %v1000
  %1002 = vmatprep.subr.mxu0 0.0
  %v1003 = vand.u32 %v144, 4294901760
  %v1004 = vsub.f32 %v144, %v1003
  %v1005 = vand.u32 %v1004, 4294901760
  %1006 = vmatpush2.xpose.msra.mxu0 %v1005
  %1007 = vmatprep.subr.mxu0 0.0
  %v1008 = vand.u32 %v141, 4294901760
  %v1009 = vsub.f32 %v141, %v1008
  %v1010 = vand.u32 %v1009, 4294901760
  %1011 = vmatpush2.xpose.msra.mxu0 %v1010
  %1012 = vmatprep.subr.mxu0 0.0
  %v1013 = vand.u32 %v138, 4294901760
  %v1014 = vsub.f32 %v138, %v1013
  %v1015 = vand.u32 %v1014, 4294901760
  %1016 = vmatpush2.xpose.msra.mxu0 %v1015
  %1017 = vmatprep.subr.mxu0 0.0
  %v1018 = vand.u32 %v135, 4294901760
  %v1019 = vsub.f32 %v135, %v1018
  %v1020 = vand.u32 %v1019, 4294901760
  %1021 = vmatpush2.xpose.msra.mxu0 %v1020
  %1022 = vmatprep.subr.mxu0 0.0
  %v1023 = vand.u32 %v132, 4294901760
  %v1024 = vsub.f32 %v132, %v1023
  %v1025 = vand.u32 %v1024, 4294901760
  %1026 = vmatpush2.xpose.msra.mxu0 %v1025
  %1027 = vmatprep.mubr.f32.mxu0 0.0
  %v1028 = vand.u32 %v72, 4294901760
  %1029 = vmatmul.mubr.f32.gmra.mxu0 %v1028
  %v1030 = vpop.f32.mrf.mxu0
  %v1031 = vadd.f32 %v836, %v1030
  %v1032 = vpop.f32.mrf.mxu0
  %v1033 = vadd.f32 %v838, %v1032
  %1034 = vmatprep.mubr.f32.mxu0 0.0
  %v1035 = vand.u32 %v75, 4294901760
  %1036 = vmatmul.mubr.f32.gmra.mxu0 %v1035
  %v1037 = vpop.f32.mrf.mxu0
  %v1038 = vadd.f32 %v845, %v1037
  %v1039 = vpop.f32.mrf.mxu0
  %v1040 = vadd.f32 %v847, %v1039
  %1041 = vmatprep.mubr.f32.mxu0 0.0
  %v1042 = vand.u32 %v78, 4294901760
  %1043 = vmatmul.mubr.f32.gmra.mxu0 %v1042
  %v1044 = vpop.f32.mrf.mxu0
  %v1045 = vadd.f32 %v854, %v1044
  %v1046 = vpop.f32.mrf.mxu0
  %v1047 = vadd.f32 %v856, %v1046
  %1048 = vmatprep.mubr.f32.mxu0 0.0
  %v1049 = vand.u32 %v81, 4294901760
  %1050 = vmatmul.mubr.f32.gmra.mxu0 %v1049
  %v1051 = vpop.f32.mrf.mxu0
  %v1052 = vadd.f32 %v863, %v1051
  %v1053 = vpop.f32.mrf.mxu0
  %v1054 = vadd.f32 %v865, %v1053
  %1055 = vdwg.mxu0
  %1056 = vmatprep.subr.mxu0 0.0
  %v1057 = vand.u32 %v129, 4294901760
  %1058 = vmatpush1.xpose.msra.mxu0 %v1057
  %1059 = vmatprep.subr.mxu0 0.0
  %v1060 = vand.u32 %v126, 4294901760
  %1061 = vmatpush1.xpose.msra.mxu0 %v1060
  %1062 = vmatprep.subr.mxu0 0.0
  %v1063 = vand.u32 %v123, 4294901760
  %1064 = vmatpush1.xpose.msra.mxu0 %v1063
  %1065 = vmatprep.subr.mxu0 0.0
  %v1066 = vand.u32 %v120, 4294901760
  %1067 = vmatpush1.xpose.msra.mxu0 %v1066
  %1068 = vmatprep.subr.mxu0 0.0
  %v1069 = vand.u32 %v117, 4294901760
  %1070 = vmatpush1.xpose.msra.mxu0 %v1069
  %1071 = vmatprep.subr.mxu0 0.0
  %v1072 = vand.u32 %v114, 4294901760
  %1073 = vmatpush1.xpose.msra.mxu0 %v1072
  %1074 = vmatprep.subr.mxu0 0.0
  %v1075 = vand.u32 %v111, 4294901760
  %1076 = vmatpush1.xpose.msra.mxu0 %v1075
  %1077 = vmatprep.subr.mxu0 0.0
  %v1078 = vand.u32 %v108, 4294901760
  %1079 = vmatpush1.xpose.msra.mxu0 %v1078
  %1080 = vmatprep.subr.mxu0 0.0
  %v1081 = vand.u32 %v105, 4294901760
  %1082 = vmatpush1.xpose.msra.mxu0 %v1081
  %1083 = vmatprep.subr.mxu0 0.0
  %v1084 = vand.u32 %v102, 4294901760
  %1085 = vmatpush1.xpose.msra.mxu0 %v1084
  %1086 = vmatprep.subr.mxu0 0.0
  %v1087 = vand.u32 %v99, 4294901760
  %1088 = vmatpush1.xpose.msra.mxu0 %v1087
  %1089 = vmatprep.subr.mxu0 0.0
  %v1090 = vand.u32 %v96, 4294901760
  %1091 = vmatpush1.xpose.msra.mxu0 %v1090
  %1092 = vmatprep.subr.mxu0 0.0
  %v1093 = vand.u32 %v93, 4294901760
  %1094 = vmatpush1.xpose.msra.mxu0 %v1093
  %1095 = vmatprep.subr.mxu0 0.0
  %v1096 = vand.u32 %v90, 4294901760
  %1097 = vmatpush1.xpose.msra.mxu0 %v1096
  %1098 = vmatprep.subr.mxu0 0.0
  %v1099 = vand.u32 %v87, 4294901760
  %1100 = vmatpush1.xpose.msra.mxu0 %v1099
  %1101 = vmatprep.subr.mxu0 0.0
  %v1102 = vand.u32 %v84, 4294901760
  %1103 = vmatpush1.xpose.msra.mxu0 %v1102
  %1104 = vmatprep.subr.mxu0 0.0
  %v1105 = vand.u32 %v177, 4294901760
  %1106 = vmatpush2.xpose.msra.mxu0 %v1105
  %1107 = vmatprep.subr.mxu0 0.0
  %v1108 = vand.u32 %v174, 4294901760
  %1109 = vmatpush2.xpose.msra.mxu0 %v1108
  %1110 = vmatprep.subr.mxu0 0.0
  %v1111 = vand.u32 %v171, 4294901760
  %1112 = vmatpush2.xpose.msra.mxu0 %v1111
  %1113 = vmatprep.subr.mxu0 0.0
  %v1114 = vand.u32 %v168, 4294901760
  %1115 = vmatpush2.xpose.msra.mxu0 %v1114
  %1116 = vmatprep.subr.mxu0 0.0
  %v1117 = vand.u32 %v165, 4294901760
  %1118 = vmatpush2.xpose.msra.mxu0 %v1117
  %1119 = vmatprep.subr.mxu0 0.0
  %v1120 = vand.u32 %v162, 4294901760
  %1121 = vmatpush2.xpose.msra.mxu0 %v1120
  %1122 = vmatprep.subr.mxu0 0.0
  %v1123 = vand.u32 %v159, 4294901760
  %1124 = vmatpush2.xpose.msra.mxu0 %v1123
  %1125 = vmatprep.subr.mxu0 0.0
  %v1126 = vand.u32 %v156, 4294901760
  %1127 = vmatpush2.xpose.msra.mxu0 %v1126
  %1128 = vmatprep.subr.mxu0 0.0
  %v1129 = vand.u32 %v153, 4294901760
  %1130 = vmatpush2.xpose.msra.mxu0 %v1129
  %1131 = vmatprep.subr.mxu0 0.0
  %v1132 = vand.u32 %v150, 4294901760
  %1133 = vmatpush2.xpose.msra.mxu0 %v1132
  %1134 = vmatprep.subr.mxu0 0.0
  %v1135 = vand.u32 %v147, 4294901760
  %1136 = vmatpush2.xpose.msra.mxu0 %v1135
  %1137 = vmatprep.subr.mxu0 0.0
  %v1138 = vand.u32 %v144, 4294901760
  %1139 = vmatpush2.xpose.msra.mxu0 %v1138
  %1140 = vmatprep.subr.mxu0 0.0
  %v1141 = vand.u32 %v141, 4294901760
  %1142 = vmatpush2.xpose.msra.mxu0 %v1141
  %1143 = vmatprep.subr.mxu0 0.0
  %v1144 = vand.u32 %v138, 4294901760
  %1145 = vmatpush2.xpose.msra.mxu0 %v1144
  %1146 = vmatprep.subr.mxu0 0.0
  %v1147 = vand.u32 %v135, 4294901760
  %1148 = vmatpush2.xpose.msra.mxu0 %v1147
  %1149 = vmatprep.subr.mxu0 0.0
  %v1150 = vand.u32 %v132, 4294901760
  %1151 = vmatpush2.xpose.msra.mxu0 %v1150
  %1152 = vmatprep.mubr.f32.mxu0 0.0
  %v1153 = vand.u32 %v72, 4294901760
  %1154 = vmatmul.mubr.f32.gmra.mxu0 %v1153
  %v1155 = vpop.f32.mrf.mxu0
  %v1156 = vadd.f32 %v1031, %v1155
  %v1157 = vpop.f32.mrf.mxu0
  %v1158 = vadd.f32 %v1033, %v1157
  %1159 = vmatprep.mubr.f32.mxu0 0.0
  %v1160 = vand.u32 %v75, 4294901760
  %1161 = vmatmul.mubr.f32.gmra.mxu0 %v1160
  %v1162 = vpop.f32.mrf.mxu0
  %v1163 = vadd.f32 %v1038, %v1162
  %v1164 = vpop.f32.mrf.mxu0
  %v1165 = vadd.f32 %v1040, %v1164
  %1166 = vmatprep.mubr.f32.mxu0 0.0
  %v1167 = vand.u32 %v78, 4294901760
  %1168 = vmatmul.mubr.f32.gmra.mxu0 %v1167
  %v1169 = vpop.f32.mrf.mxu0
  %v1170 = vadd.f32 %v1045, %v1169
  %v1171 = vpop.f32.mrf.mxu0
  %v1172 = vadd.f32 %v1047, %v1171
  %1173 = vmatprep.mubr.f32.mxu0 0.0
  %v1174 = vand.u32 %v81, 4294901760
  %1175 = vmatmul.mubr.f32.gmra.mxu0 %v1174
  %v1176 = vpop.f32.mrf.mxu0
  %v1177 = vadd.f32 %v1052, %v1176
  %v1178 = vpop.f32.mrf.mxu0
  %v1179 = vadd.f32 %v1054, %v1178
  %1180 = vdwg.mxu0
  %v1181 = vld [vmem:[#allocation2] sm:$0xff]
  %v1182 = vld [vmem:[#allocation2 + $0x8] sm:$0xff]
  %v1183 = vld [vmem:[#allocation2 + $0x10] sm:$0xff]
  %v1184 = vld [vmem:[#allocation2 + $0x18] sm:$0xff]
  %v1185 = vadd.f32 %v1156, %v1158
  %1186 = vadd.xlane.f32.xlu0 %v1185
  %v1187 = vpop.xlane.xlu0 %1186
  %v1188 = vadd.f32 %v1163, %v1165
  %1189 = vadd.xlane.f32.xlu0 %v1188
  %v1190 = vpop.xlane.xlu0 %1189
  %v1191 = vadd.f32 %v1170, %v1172
  %1192 = vadd.xlane.f32.xlu0 %v1191
  %v1193 = vpop.xlane.xlu0 %1192
  %v1194 = vadd.f32 %v1177, %v1179
  %1195 = vadd.xlane.f32.xlu0 %v1194
  %v1196 = vpop.xlane.xlu0 %1195
  %v1197 = vadd.f32 %v1181, %v1187
  %v1198 = vadd.f32 %v1182, %v1190
  %v1199 = vadd.f32 %v1183, %v1193
  %v1200 = vadd.f32 %v1184, %v1196
  %vm1201 = vcmask 39968
  %1202 = vst.msk [vmem:[#allocation2] sm:$0xff] %vm1201, %v1197
  %1203 = vst.msk [vmem:[#allocation2 + $0x8] sm:$0xff] %vm1201, %v1198
  %1204 = vst.msk [vmem:[#allocation2 + $0x10] sm:$0xff] %vm1201, %v1199
  %1205 = vst.msk [vmem:[#allocation2 + $0x18] sm:$0xff] %vm1201, %v1200
  %v1206 = vld [vmem:[%s2] sm:$0x3]
  %v1208 = vlaneseq
  %v1209 = vshrl.u32 %v1208, 7
  %v1210 = vsub.s32 0, %v1209
  %v1211 = vrot.slane %v1206, %v1210
  %v1212 = vlaneseq
  %v1213 = vshrl.u32 %v1212, 7
  %v1214 = vsub.s32 1, %v1213
  %v1215 = vrot.slane %v1206, %v1214
  %v1218 = vadd.f32 %v1156, %v1211
  %v1219 = vadd.f32 %v1158, %v1215
  %v1220 = vadd.f32 %v1163, %v1211
  %v1221 = vadd.f32 %v1165, %v1215
  %v1222 = vadd.f32 %v1170, %v1211
  %v1223 = vadd.f32 %v1172, %v1215
  %v1224 = vadd.f32 %v1177, %v1211
  %v1225 = vadd.f32 %v1179, %v1215
  %v1226 = vlaneseq
  %v1227 = vand.u32 %v1226, 127
  %v1228 = vadd.s32 %v1227, 128
  %s1229 = smul.u32 0, 256
  %v1230 = vstv %s1229
  %v1231 = vadd.s32 %v1227, %v1230
  %v1232 = vadd.s32 %v1228, %v1230
  %v1233 = vld [vmem:[#allocation2] sm:$0xff]
  %v1234 = vld [vmem:[#allocation2 + $0x8] sm:$0xff]
  %v1235 = vld [vmem:[#allocation2 + $0x10] sm:$0xff]
  %v1236 = vld [vmem:[#allocation2 + $0x18] sm:$0xff]
  %v1237 = vmax.f32 %v1218, %v1219
  %1238 = vmax.xlane.f32.xlu0 %v1237
  %v1239 = vpop.xlane.xlu0 %1238
  %v1240 = vmax.f32 %v1220, %v1221
  %1241 = vmax.xlane.f32.xlu0 %v1240
  %v1242 = vpop.xlane.xlu0 %1241
  %v1243 = vmax.f32 %v1222, %v1223
  %1244 = vmax.xlane.f32.xlu0 %v1243
  %v1245 = vpop.xlane.xlu0 %1244
  %v1246 = vmax.f32 %v1224, %v1225
  %1247 = vmax.xlane.f32.xlu0 %v1246
  %v1248 = vpop.xlane.xlu0 %1247
  %v1249 = vmax.f32 %v1233, %v1239
  %v1250 = vmax.f32 %v1234, %v1242
  %v1251 = vmax.f32 %v1235, %v1245
  %v1252 = vmax.f32 %v1236, %v1248
  %v1253 = vsub.f32 %v1233, %v1249
  %v1254 = vsub.f32 %v1234, %v1250
  %v1255 = vsub.f32 %v1235, %v1251
  %v1256 = vsub.f32 %v1236, %v1252
  %v1257 = vmul.f32 %v1253, 1.442695
  %v1258 = vpow.pop %v1257
  %v1259 = vmul.f32 %v1254, 1.442695
  %v1260 = vpow.pop %v1259
  %v1261 = vmul.f32 %v1255, 1.442695
  %v1262 = vpow.pop %v1261
  %v1263 = vmul.f32 %v1256, 1.442695
  %v1264 = vpow.pop %v1263
  %1269 = vrot.lane.b32.xlu0 %v1258, 1
  %v1270 = vpop.permute.xlu0 %1269
  %1271 = vrot.lane.b32.xlu0 %v1260, 1
  %v1272 = vpop.permute.xlu0 %1271
  %1273 = vrot.lane.b32.xlu0 %v1262, 1
  %v1274 = vpop.permute.xlu0 %1273
  %1275 = vrot.lane.b32.xlu0 %v1264, 1
  %v1276 = vpop.permute.xlu0 %1275
  %v1281 = vmul.f32 %v1233, %v1270
  %v1282 = vmul.f32 %v1234, %v1272
  %v1283 = vmul.f32 %v1235, %v1274
  %v1284 = vmul.f32 %v1236, %v1276
  %1286 = vset.pattern.permute.xlu0 0
  %1287 = vperm.xlu0 %1286, %v1249
  %v1288 = vpop.permute.xlu0 %1287
  %1291 = vset.pattern.permute.xlu0 0
  %1292 = vperm.xlu0 %1291, %v1250
  %v1293 = vpop.permute.xlu0 %1292
  %1296 = vset.pattern.permute.xlu0 0
  %1297 = vperm.xlu0 %1296, %v1251
  %v1298 = vpop.permute.xlu0 %1297
  %1301 = vset.pattern.permute.xlu0 0
  %1302 = vperm.xlu0 %1301, %v1252
  %v1303 = vpop.permute.xlu0 %1302
  %v1305 = vsub.f32 %v1218, %v1288
  %v1306 = vsub.f32 %v1219, %v1288
  %v1307 = vsub.f32 %v1220, %v1293
  %v1308 = vsub.f32 %v1221, %v1293
  %v1309 = vsub.f32 %v1222, %v1298
  %v1310 = vsub.f32 %v1223, %v1298
  %v1311 = vsub.f32 %v1224, %v1303
  %v1312 = vsub.f32 %v1225, %v1303
  %v1313 = vmul.f32 %v1305, 1.442695
  %v1314 = vpow.pop %v1313
  %v1315 = vmul.f32 %v1306, 1.442695
  %v1316 = vpow.pop %v1315
  %v1317 = vmul.f32 %v1307, 1.442695
  %v1318 = vpow.pop %v1317
  %v1319 = vmul.f32 %v1308, 1.442695
  %v1320 = vpow.pop %v1319
  %v1321 = vmul.f32 %v1309, 1.442695
  %v1322 = vpow.pop %v1321
  %v1323 = vmul.f32 %v1310, 1.442695
  %v1324 = vpow.pop %v1323
  %v1325 = vmul.f32 %v1311, 1.442695
  %v1326 = vpow.pop %v1325
  %v1327 = vmul.f32 %v1312, 1.442695
  %v1328 = vpow.pop %v1327
  %v1329 = vadd.f32 %v1314, %v1316
  %1330 = vadd.xlane.f32.xlu0 %v1329
  %v1331 = vpop.xlane.xlu0 %1330
  %v1332 = vadd.f32 %v1318, %v1320
  %1333 = vadd.xlane.f32.xlu0 %v1332
  %v1334 = vpop.xlane.xlu0 %1333
  %v1335 = vadd.f32 %v1322, %v1324
  %1336 = vadd.xlane.f32.xlu0 %v1335
  %v1337 = vpop.xlane.xlu0 %1336
  %v1338 = vadd.f32 %v1326, %v1328
  %1339 = vadd.xlane.f32.xlu0 %v1338
  %v1340 = vpop.xlane.xlu0 %1339
  %v1341 = vadd.f32 %v1281, %v1331
  %v1342 = vadd.f32 %v1282, %v1334
  %v1343 = vadd.f32 %v1283, %v1337
  %v1344 = vadd.f32 %v1284, %v1340
  %vm1345 = vcmask 15368
  %1346 = vst.msk [vmem:[#allocation2] sm:$0xff] %vm1345, %v1341
  %1347 = vst.msk [vmem:[#allocation2 + $0x8] sm:$0xff] %vm1345, %v1342
  %1348 = vst.msk [vmem:[#allocation2 + $0x10] sm:$0xff] %vm1345, %v1343
  %1349 = vst.msk [vmem:[#allocation2 + $0x18] sm:$0xff] %vm1345, %v1344
  %vm1350 = vcmask 7168
  %1351 = vst.msk [vmem:[#allocation2] sm:$0xff] %vm1350, %v1249
  %1352 = vst.msk [vmem:[#allocation2 + $0x8] sm:$0xff] %vm1350, %v1250
  %1353 = vst.msk [vmem:[#allocation2 + $0x10] sm:$0xff] %vm1350, %v1251
  %1354 = vst.msk [vmem:[#allocation2 + $0x18] sm:$0xff] %vm1350, %v1252
  %v1355 = vld [vmem:[#allocation2] sm:$0xff]
  %v1356 = vld [vmem:[#allocation2 + $0x8] sm:$0xff]
  %v1357 = vld [vmem:[#allocation2 + $0x10] sm:$0xff]
  %v1358 = vld [vmem:[#allocation2 + $0x18] sm:$0xff]
  %v1359 = vld [vmem:[%s3] sm:$0xff]
  %v1360 = vld [vmem:[%s3 + $0x8] sm:$0xff]
  %v1361 = vld [vmem:[%s3 + $0x10] sm:$0xff]
  %v1362 = vld [vmem:[%s3 + $0x18] sm:$0xff]
  %1363 = vset.pattern.permute.xlu0 0
  %1364 = vperm.xlu0 %1363, %v1359
  %v1365 = vpop.permute.xlu0 %1364
  %1366 = vset.pattern.permute.xlu0 0
  %1367 = vperm.xlu0 %1366, %v1360
  %v1368 = vpop.permute.xlu0 %1367
  %1369 = vset.pattern.permute.xlu0 0
  %1370 = vperm.xlu0 %1369, %v1361
  %v1371 = vpop.permute.xlu0 %1370
  %1372 = vset.pattern.permute.xlu0 0
  %1373 = vperm.xlu0 %1372, %v1362
  %v1374 = vpop.permute.xlu0 %1373
  %vm1375 = vcmp.eq.s32.totalorder %v1231, %v1365
  %vm1376 = vcmp.eq.s32.totalorder %v1232, %v1365
  %vm1377 = vcmp.eq.s32.totalorder %v1231, %v1368
  %vm1378 = vcmp.eq.s32.totalorder %v1232, %v1368
  %vm1379 = vcmp.eq.s32.totalorder %v1231, %v1371
  %vm1380 = vcmp.eq.s32.totalorder %v1232, %v1371
  %vm1381 = vcmp.eq.s32.totalorder %v1231, %v1374
  %vm1382 = vcmp.eq.s32.totalorder %v1232, %v1374
  %v1383 = vsel %vm1375, %v1218, 0.0
  %v1384 = vsel %vm1376, %v1219, 0.0
  %v1385 = vsel %vm1377, %v1220, 0.0
  %v1386 = vsel %vm1378, %v1221, 0.0
  %v1387 = vsel %vm1379, %v1222, 0.0
  %v1388 = vsel %vm1380, %v1223, 0.0
  %v1389 = vsel %vm1381, %v1224, 0.0
  %v1390 = vsel %vm1382, %v1225, 0.0
  %v1391 = vadd.f32 %v1383, %v1384
  %1392 = vadd.xlane.f32.xlu0 %v1391
  %v1393 = vpop.xlane.xlu0 %1392
  %v1394 = vadd.f32 %v1385, %v1386
  %1395 = vadd.xlane.f32.xlu0 %v1394
  %v1396 = vpop.xlane.xlu0 %1395
  %v1397 = vadd.f32 %v1387, %v1388
  %1398 = vadd.xlane.f32.xlu0 %v1397
  %v1399 = vpop.xlane.xlu0 %1398
  %v1400 = vadd.f32 %v1389, %v1390
  %1401 = vadd.xlane.f32.xlu0 %v1400
  %v1402 = vpop.xlane.xlu0 %1401
  %v1403 = vadd.f32 %v1355, %v1393
  %v1404 = vadd.f32 %v1356, %v1396
  %v1405 = vadd.f32 %v1357, %v1399
  %v1406 = vadd.f32 %v1358, %v1402
  %vm1407 = vcmask 23568
  %1408 = vst.msk [vmem:[#allocation2] sm:$0xff] %vm1407, %v1403
  %1409 = vst.msk [vmem:[#allocation2 + $0x8] sm:$0xff] %vm1407, %v1404
  %1410 = vst.msk [vmem:[#allocation2 + $0x10] sm:$0xff] %vm1407, %v1405
  %1411 = vst.msk [vmem:[#allocation2 + $0x18] sm:$0xff] %vm1407, %v1406
  %v1412 = vld [vmem:[#allocation2] sm:$0xff]
  %v1413 = vld [vmem:[#allocation2 + $0x8] sm:$0xff]
  %v1414 = vld [vmem:[#allocation2 + $0x10] sm:$0xff]
  %v1415 = vld [vmem:[#allocation2 + $0x18] sm:$0xff]
  %v1416 = vld [vmem:[%s4] sm:$0xff]
  %v1417 = vld [vmem:[%s4 + $0x8] sm:$0xff]
  %v1418 = vld [vmem:[%s4 + $0x10] sm:$0xff]
  %v1419 = vld [vmem:[%s4 + $0x18] sm:$0xff]
  %1420 = vset.pattern.permute.xlu0 0
  %1421 = vperm.xlu0 %1420, %v1416
  %v1422 = vpop.permute.xlu0 %1421
  %1423 = vset.pattern.permute.xlu0 0
  %1424 = vperm.xlu0 %1423, %v1417
  %v1425 = vpop.permute.xlu0 %1424
  %1426 = vset.pattern.permute.xlu0 0
  %1427 = vperm.xlu0 %1426, %v1418
  %v1428 = vpop.permute.xlu0 %1427
  %1429 = vset.pattern.permute.xlu0 0
  %1430 = vperm.xlu0 %1429, %v1419
  %v1431 = vpop.permute.xlu0 %1430
  %vm1432 = vcmp.eq.s32.totalorder %v1231, %v1422
  %vm1433 = vcmp.eq.s32.totalorder %v1232, %v1422
  %vm1434 = vcmp.eq.s32.totalorder %v1231, %v1425
  %vm1435 = vcmp.eq.s32.totalorder %v1232, %v1425
  %vm1436 = vcmp.eq.s32.totalorder %v1231, %v1428
  %vm1437 = vcmp.eq.s32.totalorder %v1232, %v1428
  %vm1438 = vcmp.eq.s32.totalorder %v1231, %v1431
  %vm1439 = vcmp.eq.s32.totalorder %v1232, %v1431
  %v1440 = vsel %vm1432, %v1218, 0.0
  %v1441 = vsel %vm1433, %v1219, 0.0
  %v1442 = vsel %vm1434, %v1220, 0.0
  %v1443 = vsel %vm1435, %v1221, 0.0
  %v1444 = vsel %vm1436, %v1222, 0.0
  %v1445 = vsel %vm1437, %v1223, 0.0
  %v1446 = vsel %vm1438, %v1224, 0.0
  %v1447 = vsel %vm1439, %v1225, 0.0
  %v1448 = vadd.f32 %v1440, %v1441
  %1449 = vadd.xlane.f32.xlu0 %v1448
  %v1450 = vpop.xlane.xlu0 %1449
  %v1451 = vadd.f32 %v1442, %v1443
  %1452 = vadd.xlane.f32.xlu0 %v1451
  %v1453 = vpop.xlane.xlu0 %1452
  %v1454 = vadd.f32 %v1444, %v1445
  %1455 = vadd.xlane.f32.xlu0 %v1454
  %v1456 = vpop.xlane.xlu0 %1455
  %v1457 = vadd.f32 %v1446, %v1447
  %1458 = vadd.xlane.f32.xlu0 %v1457
  %v1459 = vpop.xlane.xlu0 %1458
  %v1460 = vadd.f32 %v1412, %v1450
  %v1461 = vadd.f32 %v1413, %v1453
  %v1462 = vadd.f32 %v1414, %v1456
  %v1463 = vadd.f32 %v1415, %v1459
  %vm1464 = vcmask 31768
  %1465 = vst.msk [vmem:[#allocation2] sm:$0xff] %vm1464, %v1460
  %1466 = vst.msk [vmem:[#allocation2 + $0x8] sm:$0xff] %vm1464, %v1461
  %1467 = vst.msk [vmem:[#allocation2 + $0x10] sm:$0xff] %vm1464, %v1462
  %1468 = vst.msk [vmem:[#allocation2 + $0x18] sm:$0xff] %vm1464, %v1463
  // Predicated region
  $region26: #{liger_lm_head_orpo_forward.1} parent=0 // pred_check
    %p1469 = pneg %p20
  $region27: #{liger_lm_head_orpo_forward.1} parent=0 // pred_check_branch
    %1471 = sbr.rel (%p1469) target = $region29
  $region28: #{liger_lm_head_orpo_forward.1} parent=0 // pred_region
    %v1472 = vld [vmem:[#allocation2] sm:$0xff]
    %v1473 = vld [vmem:[#allocation2 + $0x8] sm:$0xff]
    %v1474 = vld [vmem:[#allocation2 + $0x10] sm:$0xff]
    %v1475 = vld [vmem:[#allocation2 + $0x18] sm:$0xff]
    %1480 = vrot.lane.b32.xlu0 %v1472, 126
    %v1481 = vpop.permute.xlu0 %1480
    %1482 = vrot.lane.b32.xlu0 %v1473, 126
    %v1483 = vpop.permute.xlu0 %1482
    %1484 = vrot.lane.b32.xlu0 %v1474, 126
    %v1485 = vpop.permute.xlu0 %1484
    %1486 = vrot.lane.b32.xlu0 %v1475, 126
    %v1487 = vpop.permute.xlu0 %1486
    %1492 = vst.msk [vmem:[%s5] sm:$0xff] %vm1350, %v1481
    %1493 = vst.msk [vmem:[%s5 + $0x8] sm:$0xff] %vm1350, %v1483
    %1494 = vst.msk [vmem:[%s5 + $0x10] sm:$0xff] %vm1350, %v1485
    %1495 = vst.msk [vmem:[%s5 + $0x18] sm:$0xff] %vm1350, %v1487
    %v1496 = vld [vmem:[#allocation2] sm:$0xff]
    %v1497 = vld [vmem:[#allocation2 + $0x8] sm:$0xff]
    %v1498 = vld [vmem:[#allocation2 + $0x10] sm:$0xff]
    %v1499 = vld [vmem:[#allocation2 + $0x18] sm:$0xff]
    %1504 = vrot.lane.b32.xlu0 %v1496, 126
    %v1505 = vpop.permute.xlu0 %1504
    %1506 = vrot.lane.b32.xlu0 %v1497, 126
    %v1507 = vpop.permute.xlu0 %1506
    %1508 = vrot.lane.b32.xlu0 %v1498, 126
    %v1509 = vpop.permute.xlu0 %1508
    %1510 = vrot.lane.b32.xlu0 %v1499, 126
    %v1511 = vpop.permute.xlu0 %1510
    %1516 = vst.msk [vmem:[%s5] sm:$0xff] %vm1345, %v1505
    %1517 = vst.msk [vmem:[%s5 + $0x8] sm:$0xff] %vm1345, %v1507
    %1518 = vst.msk [vmem:[%s5 + $0x10] sm:$0xff] %vm1345, %v1509
    %1519 = vst.msk [vmem:[%s5 + $0x18] sm:$0xff] %vm1345, %v1511
    %v1520 = vld [vmem:[#allocation2] sm:$0xff]
    %v1521 = vld [vmem:[#allocation2 + $0x8] sm:$0xff]
    %v1522 = vld [vmem:[#allocation2 + $0x10] sm:$0xff]
    %v1523 = vld [vmem:[#allocation2 + $0x18] sm:$0xff]
    %v1524 = vlog2.pop %v1520
    %v1525 = vmul.f32 %v1524, 0.6931472
    %v1526 = vlog2.pop %v1521
    %v1527 = vmul.f32 %v1526, 0.6931472
    %v1528 = vlog2.pop %v1522
    %v1529 = vmul.f32 %v1528, 0.6931472
    %v1530 = vlog2.pop %v1523
    %v1531 = vmul.f32 %v1530, 0.6931472
    %1536 = vrot.lane.b32.xlu0 %v1525, 127
    %v1537 = vpop.permute.xlu0 %1536
    %1538 = vrot.lane.b32.xlu0 %v1527, 127
    %v1539 = vpop.permute.xlu0 %1538
    %1540 = vrot.lane.b32.xlu0 %v1529, 127
    %v1541 = vpop.permute.xlu0 %1540
    %1542 = vrot.lane.b32.xlu0 %v1531, 127
    %v1543 = vpop.permute.xlu0 %1542
    %v1548 = vadd.f32 %v1520, %v1537
    %v1549 = vadd.f32 %v1521, %v1539
    %v1550 = vadd.f32 %v1522, %v1541
    %v1551 = vadd.f32 %v1523, %v1543
    %1556 = vrot.lane.b32.xlu0 %v1548, 2
    %v1557 = vpop.permute.xlu0 %1556
    %1558 = vrot.lane.b32.xlu0 %v1549, 2
    %v1559 = vpop.permute.xlu0 %1558
    %1560 = vrot.lane.b32.xlu0 %v1550, 2
    %v1561 = vpop.permute.xlu0 %1560
    %1562 = vrot.lane.b32.xlu0 %v1551, 2
    %v1563 = vpop.permute.xlu0 %1562
    %1568 = vst.msk [vmem:[%s5] sm:$0xff] %vm1407, %v1557
    %1569 = vst.msk [vmem:[%s5 + $0x8] sm:$0xff] %vm1407, %v1559
    %1570 = vst.msk [vmem:[%s5 + $0x10] sm:$0xff] %vm1407, %v1561
    %1571 = vst.msk [vmem:[%s5 + $0x18] sm:$0xff] %vm1407, %v1563
    %v1572 = vld [vmem:[#allocation2] sm:$0xff]
    %v1573 = vld [vmem:[#allocation2 + $0x8] sm:$0xff]
    %v1574 = vld [vmem:[#allocation2 + $0x10] sm:$0xff]
    %v1575 = vld [vmem:[#allocation2 + $0x18] sm:$0xff]
    %1580 = vrot.lane.b32.xlu0 %v1572, 127
    %v1581 = vpop.permute.xlu0 %1580
    %1582 = vrot.lane.b32.xlu0 %v1573, 127
    %v1583 = vpop.permute.xlu0 %1582
    %1584 = vrot.lane.b32.xlu0 %v1574, 127
    %v1585 = vpop.permute.xlu0 %1584
    %1586 = vrot.lane.b32.xlu0 %v1575, 127
    %v1587 = vpop.permute.xlu0 %1586
    %1592 = vst.msk [vmem:[%s5] sm:$0xff] %vm1464, %v1581
    %1593 = vst.msk [vmem:[%s5 + $0x8] sm:$0xff] %vm1464, %v1583
    %1594 = vst.msk [vmem:[%s5 + $0x10] sm:$0xff] %vm1464, %v1585
    %1595 = vst.msk [vmem:[%s5 + $0x18] sm:$0xff] %vm1464, %v1587
  $region29: #{liger_lm_head_orpo_forward.1} parent=0 // pred_fallthru
    _
  // Predicated region
  $region30: #{liger_lm_head_orpo_forward.1} parent=0 // pred_check
    _
  $region31: #{liger_lm_head_orpo_forward.1} parent=0 // pred_check_branch
    %1597 = sbr.rel (0) target = $region33
  $region32: #{liger_lm_head_orpo_forward.1} parent=0 // pred_region
    _
  $region33: #{liger_lm_head_orpo_forward.1} parent=0 // pred_fallthru
    _
  // Predicated region
  $region34: #{liger_lm_head_orpo_forward.1} parent=0 // pred_check
    _
  $region35: #{liger_lm_head_orpo_forward.1} parent=0 // pred_check_branch
    %1599 = sbr.rel (0) target = $region37
  $region36: #{liger_lm_head_orpo_forward.1} parent=0 // pred_region
    _
  $region37: #{liger_lm_head_orpo_forward.1} parent=0 // pred_fallthru
    _

</llo_original>
